<compile_context>
chip_gen: v5e
topology: v5e:2x2
jax: 0.10.0
libtpu: 0.0.40
codegen_flags: <defaults>
</compile_context>

<pallas_src>
import jax
import jax.numpy as jnp
from jax import lax
from jax.experimental import pallas as pl
from jax.experimental.pallas import tpu as pltpu


def _kp_fused_kernel(z_ref, rec_ref, pred_ref):
    """Fused gram -> ridge -> E x E solve -> apply, one grid step, all batches.

    z_ref:    (B, L, E) VMEM
    rec_ref:  (B, L, E) VMEM out   z_rec  = [ z[:, :1] ; x @ K ]
    pred_ref: (B, 1, E) VMEM out   z_pred = z[:, -1:] @ K
    """
    B, L, E = z_ref.shape
    f32 = jnp.float32
    eps_rel, eps_abs = 1e-6, 1e-10

    # Small static masks shared by all batches.
    row_iota = lax.broadcasted_iota(jnp.int32, (E, 1), 0)                 # (E, 1)
    diag = (lax.broadcasted_iota(jnp.int32, (E, E), 0)
            == lax.broadcasted_iota(jnp.int32, (E, E), 1)).astype(f32)    # (E, E)

    # B is tiny at these shapes: static unroll, no grid / dispatch overhead.
    for b in range(B):
        z = z_ref[b]                                  # (L, E)
        x = z[:-1, :].astype(f32)                     # (L-1, E)
        y = z[1:, :].astype(f32)                      # (L-1, E)

        # Normal-equation operands: contract over the time axis directly
        # (no explicit x.T transpose materialized in vregs).
        dn = (((0,), (0,)), ((), ()))
        g = lax.dot_general(x, x, dn, preferred_element_type=f32)   # x^T x (E,E)
        c = lax.dot_general(x, y, dn, preferred_element_type=f32)   # x^T y (E,E)

        # Relative ridge with an absolute floor (fused here; no XLA glue ops,
        # no (B,E,E) HBM round-trip). Keeps G SPD even for a ~zero batch.
        tr = jnp.sum(g * diag)
        ridge = eps_rel * (tr / E) + eps_abs
        a = g + ridge * diag                          # (E, E), SPD
        r = c                                         # (E, E) -> becomes K

        # Gauss-Jordan solve of a @ K = c (no pivoting needed: a is SPD).
        # E is small, so this is a fully unrolled register-resident loop of
        # cheap VPU ops; no scalar extraction (everything stays (1,1)/(E,1)).
        for i in range(E):
            piv = a[i : i + 1, i : i + 1]             # (1, 1)
            na = a[i : i + 1, :] / piv                # (1, E) normalized pivot row
            nr = r[i : i + 1, :] / piv                # (1, E)
            f = a[:, i : i + 1]                       # (E, 1) elimination factors
            is_i = row_iota == i                      # (E, 1)
            a = jnp.where(is_i, na, a - f * na)
            r = jnp.where(is_i, nr, r - f * nr)
        k = r                                         # (E, E) f32  = G^{-1} C

        # Apply: one MXU pass over all L rows. Operands in z.dtype (bf16 MXU
        # path when z is bf16); accumulation stays f32.
        zk = jnp.dot(z, k.astype(z.dtype), preferred_element_type=f32)   # (L, E)
        zk = zk.astype(rec_ref.dtype)

        # Build the full rec tile in registers and emit ONE unmasked store.
        rec = jnp.concatenate([z[:1, :].astype(rec_ref.dtype), zk[:-1, :]], axis=0)
        rec_ref[b] = rec                              # rows: [ z[0] ; x @ K ]
        pred_ref[b] = zk[-1:, :]                      # z[-1:] @ K


def kp_layer_forward(z):
    """Pallas implementation of KPLayer.forward. z: (B, L, E)."""
    B, L, E = z.shape
    assert L > 1, "Input sequence length should be greater than 1"

    return pl.pallas_call(
        _kp_fused_kernel,
        out_shape=(
            jax.ShapeDtypeStruct((B, L, E), z.dtype),
            jax.ShapeDtypeStruct((B, 1, E), z.dtype),
        ),
        grid=(1,),
        in_specs=[pl.BlockSpec((B, L, E), lambda i: (0, 0, 0))],
        out_specs=(
            pl.BlockSpec((B, L, E), lambda i: (0, 0, 0)),
            pl.BlockSpec((B, 1, E), lambda i: (0, 0, 0)),
        ),
        # Single grid step: no 'parallel' split requested (pure overhead at
        # these sizes — see perf review).
        compiler_params=pltpu.CompilerParams(dimension_semantics=("arbitrary",)),
    )(z)


def _reference(z):
    """Pure-JAX reference (per-batch lstsq) for correctness checking."""
    B, L, E = z.shape
    x, y = z[:, :-1], z[:, 1:]
    Ks = []
    for b in range(B):
        Kb, _, _, _ = jnp.linalg.lstsq(x[b], y[b])
        Ks.append(Kb)
    K = jnp.stack(Ks)
    z_pred = jnp.einsum("ble,bef->blf", z[:, -1:], K)
    z_rec = jnp.concatenate([z[:, :1], jnp.einsum("ble,bef->blf", x, K)], axis=1)
    return z_rec, z_pred


if __name__ == "__main__":
    # KPLayer has no trainable parameters (K is computed from the data).
    # Small shapes: B=2, L=12, dynamic_dim E=8 (L-1 >= E so lstsq is
    # overdetermined / full rank, matching the normal-equations path).
    B, L, E = 2, 12, 8
    key = jax.random.PRNGKey(0)
    z = jax.random.normal(key, (B, L, E), dtype=jnp.float32)

    z_rec, z_pred = jax.jit(kp_layer_forward)(z)
    jax.block_until_ready((z_rec, z_pred))

    # Sanity check against a pure-JAX lstsq reference.
    z_rec_ref, z_pred_ref = _reference(z)
    assert z_rec.shape == (B, L, E) and z_pred.shape == (B, 1, E)
    assert jnp.allclose(z_rec, z_rec_ref, atol=5e-3, rtol=5e-3)
    assert jnp.allclose(z_pred, z_pred_ref, atol=5e-3, rtol=5e-3)

    print("KERNEL_OK")
</pallas_src>

<mosaic_0001>
module attributes {stable_mosaic.version = 11 : i64} {
  func.func @_kp_fused_kernel(%arg0: i32, %arg1: memref<2x12x8xf32, #tpu.memory_space<vmem>>, %arg2: memref<2x12x8xf32, #tpu.memory_space<vmem>>, %arg3: memref<2x1x8xf32, #tpu.memory_space<vmem>>) attributes {dimension_semantics = [#tpu.dimension_semantics<arbitrary>], iteration_bounds = array<i64: 1>, scalar_prefetch = 0 : i64, scratch_operands = 0 : i64, tpu.core_type = #tpu.core_type<tc>, window_params = [{pipeline_mode = #tpu.pipeline_mode<synchronous>, transform_indices = @transform_0, window_bounds = array<i64: 2, 12, 8>}, {pipeline_mode = #tpu.pipeline_mode<synchronous>, transform_indices = @transform_1, window_bounds = array<i64: 2, 12, 8>}, {pipeline_mode = #tpu.pipeline_mode<synchronous>, transform_indices = @transform_2, window_bounds = array<i64: 2, 1, 8>}]} {
    %0 = tpu.iota {dimensions = array<i32: 0>} : vector<8x1xi32>
    %1 = tpu.iota {dimensions = array<i32: 0>} : vector<8x8xi32>
    %2 = tpu.iota {dimensions = array<i32: 1>} : vector<8x8xi32>
    %3 = arith.cmpi eq, %1, %2 : vector<8x8xi32>
    %4 = arith.extui %3 : vector<8x8xi1> to vector<8x8xi32>
    %5 = arith.sitofp %4 : vector<8x8xi32> to vector<8x8xf32>
    %c0 = arith.constant 0 : index
    %c0_0 = arith.constant 0 : index
    %c0_1 = arith.constant 0 : index
    %6 = vector.load %arg1[%c0, %c0_0, %c0_1] : memref<2x12x8xf32, #tpu.memory_space<vmem>>, vector<1x12x8xf32>
    %7 = vector.shape_cast %6 : vector<1x12x8xf32> to vector<12x8xf32>
    %8 = vector.extract_strided_slice %7 {offsets = [0, 0], sizes = [11, 8], strides = [1, 1]} : vector<12x8xf32> to vector<11x8xf32>
    %9 = vector.extract_strided_slice %7 {offsets = [1, 0], sizes = [11, 8], strides = [1, 1]} : vector<12x8xf32> to vector<11x8xf32>
    %cst = arith.constant dense<0.000000e+00> : vector<8x8xf32>
    %10 = tpu.matmul %8, %8, %cst {dimension_numbers = #tpu.dot_dimension_numbers<[0], [0], [1], [1], [0, 1, 1, 1], [], []>} : vector<11x8xf32>, vector<11x8xf32>, vector<8x8xf32> -> vector<8x8xf32>
    %cst_2 = arith.constant dense<0.000000e+00> : vector<8x8xf32>
    %11 = tpu.matmul %8, %9, %cst_2 {dimension_numbers = #tpu.dot_dimension_numbers<[0], [0], [1], [1], [0, 1, 1, 1], [], []>} : vector<11x8xf32>, vector<11x8xf32>, vector<8x8xf32> -> vector<8x8xf32>
    %12 = arith.mulf %10, %5 : vector<8x8xf32>
    %13 = vector.shape_cast %12 : vector<8x8xf32> to vector<1x8x8xf32>
    %cst_3 = arith.constant dense<0.000000e+00> : vector<1xf32>
    %14 = vector.multi_reduction <add>, %13, %cst_3 [1, 2] : vector<1x8x8xf32> to vector<1xf32>
    %15 = vector.shape_cast %14 : vector<1xf32> to vector<1x1x1xf32>
    %16 = vector.extract %15[0, 0, 0] : f32 from vector<1x1x1xf32>
    %cst_4 = arith.constant 8.000000e+00 : f32
    %17 = arith.divf %16, %cst_4 : f32
    %cst_5 = arith.constant 9.99999997E-7 : f32
    %18 = arith.mulf %cst_5, %17 : f32
    %cst_6 = arith.constant 1.000000e-10 : f32
    %19 = arith.addf %18, %cst_6 : f32
    %20 = vector.broadcast %19 : f32 to vector<8x8xf32>
    %21 = arith.mulf %20, %5 : vector<8x8xf32>
    %22 = arith.addf %10, %21 : vector<8x8xf32>
    %23 = vector.extract_strided_slice %22 {offsets = [0, 0], sizes = [1, 1], strides = [1, 1]} : vector<8x8xf32> to vector<1x1xf32>
    %24 = vector.extract_strided_slice %22 {offsets = [0, 0], sizes = [1, 8], strides = [1, 1]} : vector<8x8xf32> to vector<1x8xf32>
    %25 = vector.broadcast %23 : vector<1x1xf32> to vector<1x8xf32>
    %26 = arith.divf %24, %25 : vector<1x8xf32>
    %27 = vector.extract_strided_slice %11 {offsets = [0, 0], sizes = [1, 8], strides = [1, 1]} : vector<8x8xf32> to vector<1x8xf32>
    %28 = vector.broadcast %23 : vector<1x1xf32> to vector<1x8xf32>
    %29 = arith.divf %27, %28 : vector<1x8xf32>
    %30 = vector.extract_strided_slice %22 {offsets = [0, 0], sizes = [8, 1], strides = [1, 1]} : vector<8x8xf32> to vector<8x1xf32>
    %c0_i32 = arith.constant 0 : i32
    %31 = vector.broadcast %c0_i32 : i32 to vector<8x1xi32>
    %32 = arith.cmpi eq, %0, %31 : vector<8x1xi32>
    %33 = vector.broadcast %30 : vector<8x1xf32> to vector<8x8xf32>
    %34 = vector.broadcast %26 : vector<1x8xf32> to vector<8x8xf32>
    %35 = arith.mulf %33, %34 : vector<8x8xf32>
    %36 = arith.subf %22, %35 : vector<8x8xf32>
    %37 = vector.shape_cast %32 : vector<8x1xi1> to vector<8x1xi1>
    %38 = vector.broadcast %37 : vector<8x1xi1> to vector<8x8xi1>
    %39 = vector.shape_cast %26 : vector<1x8xf32> to vector<1x8xf32>
    %40 = vector.broadcast %39 : vector<1x8xf32> to vector<8x8xf32>
    %41 = arith.select %38, %40, %36 : vector<8x8xi1>, vector<8x8xf32>
    %42 = vector.broadcast %30 : vector<8x1xf32> to vector<8x8xf32>
    %43 = vector.broadcast %29 : vector<1x8xf32> to vector<8x8xf32>
    %44 = arith.mulf %42, %43 : vector<8x8xf32>
    %45 = arith.subf %11, %44 : vector<8x8xf32>
    %46 = vector.shape_cast %32 : vector<8x1xi1> to vector<8x1xi1>
    %47 = vector.broadcast %46 : vector<8x1xi1> to vector<8x8xi1>
    %48 = vector.shape_cast %29 : vector<1x8xf32> to vector<1x8xf32>
    %49 = vector.broadcast %48 : vector<1x8xf32> to vector<8x8xf32>
    %50 = arith.select %47, %49, %45 : vector<8x8xi1>, vector<8x8xf32>
    %51 = vector.extract_strided_slice %41 {offsets = [1, 1], sizes = [1, 1], strides = [1, 1]} : vector<8x8xf32> to vector<1x1xf32>
    %52 = vector.extract_strided_slice %41 {offsets = [1, 0], sizes = [1, 8], strides = [1, 1]} : vector<8x8xf32> to vector<1x8xf32>
    %53 = vector.broadcast %51 : vector<1x1xf32> to vector<1x8xf32>
    %54 = arith.divf %52, %53 : vector<1x8xf32>
    %55 = vector.extract_strided_slice %50 {offsets = [1, 0], sizes = [1, 8], strides = [1, 1]} : vector<8x8xf32> to vector<1x8xf32>
    %56 = vector.broadcast %51 : vector<1x1xf32> to vector<1x8xf32>
    %57 = arith.divf %55, %56 : vector<1x8xf32>
    %58 = vector.extract_strided_slice %41 {offsets = [0, 1], sizes = [8, 1], strides = [1, 1]} : vector<8x8xf32> to vector<8x1xf32>
    %c1_i32 = arith.constant 1 : i32
    %59 = vector.broadcast %c1_i32 : i32 to vector<8x1xi32>
    %60 = arith.cmpi eq, %0, %59 : vector<8x1xi32>
    %61 = vector.broadcast %58 : vector<8x1xf32> to vector<8x8xf32>
    %62 = vector.broadcast %54 : vector<1x8xf32> to vector<8x8xf32>
    %63 = arith.mulf %61, %62 : vector<8x8xf32>
    %64 = arith.subf %41, %63 : vector<8x8xf32>
    %65 = vector.shape_cast %60 : vector<8x1xi1> to vector<8x1xi1>
    %66 = vector.broadcast %65 : vector<8x1xi1> to vector<8x8xi1>
    %67 = vector.shape_cast %54 : vector<1x8xf32> to vector<1x8xf32>
    %68 = vector.broadcast %67 : vector<1x8xf32> to vector<8x8xf32>
    %69 = arith.select %66, %68, %64 : vector<8x8xi1>, vector<8x8xf32>
    %70 = vector.broadcast %58 : vector<8x1xf32> to vector<8x8xf32>
    %71 = vector.broadcast %57 : vector<1x8xf32> to vector<8x8xf32>
    %72 = arith.mulf %70, %71 : vector<8x8xf32>
    %73 = arith.subf %50, %72 : vector<8x8xf32>
    %74 = vector.shape_cast %60 : vector<8x1xi1> to vector<8x1xi1>
    %75 = vector.broadcast %74 : vector<8x1xi1> to vector<8x8xi1>
    %76 = vector.shape_cast %57 : vector<1x8xf32> to vector<1x8xf32>
    %77 = vector.broadcast %76 : vector<1x8xf32> to vector<8x8xf32>
    %78 = arith.select %75, %77, %73 : vector<8x8xi1>, vector<8x8xf32>
    %79 = vector.extract_strided_slice %69 {offsets = [2, 2], sizes = [1, 1], strides = [1, 1]} : vector<8x8xf32> to vector<1x1xf32>
    %80 = vector.extract_strided_slice %69 {offsets = [2, 0], sizes = [1, 8], strides = [1, 1]} : vector<8x8xf32> to vector<1x8xf32>
    %81 = vector.broadcast %79 : vector<1x1xf32> to vector<1x8xf32>
    %82 = arith.divf %80, %81 : vector<1x8xf32>
    %83 = vector.extract_strided_slice %78 {offsets = [2, 0], sizes = [1, 8], strides = [1, 1]} : vector<8x8xf32> to vector<1x8xf32>
    %84 = vector.broadcast %79 : vector<1x1xf32> to vector<1x8xf32>
    %85 = arith.divf %83, %84 : vector<1x8xf32>
    %86 = vector.extract_strided_slice %69 {offsets = [0, 2], sizes = [8, 1], strides = [1, 1]} : vector<8x8xf32> to vector<8x1xf32>
    %c2_i32 = arith.constant 2 : i32
    %87 = vector.broadcast %c2_i32 : i32 to vector<8x1xi32>
    %88 = arith.cmpi eq, %0, %87 : vector<8x1xi32>
    %89 = vector.broadcast %86 : vector<8x1xf32> to vector<8x8xf32>
    %90 = vector.broadcast %82 : vector<1x8xf32> to vector<8x8xf32>
    %91 = arith.mulf %89, %90 : vector<8x8xf32>
    %92 = arith.subf %69, %91 : vector<8x8xf32>
    %93 = vector.shape_cast %88 : vector<8x1xi1> to vector<8x1xi1>
    %94 = vector.broadcast %93 : vector<8x1xi1> to vector<8x8xi1>
    %95 = vector.shape_cast %82 : vector<1x8xf32> to vector<1x8xf32>
    %96 = vector.broadcast %95 : vector<1x8xf32> to vector<8x8xf32>
    %97 = arith.select %94, %96, %92 : vector<8x8xi1>, vector<8x8xf32>
    %98 = vector.broadcast %86 : vector<8x1xf32> to vector<8x8xf32>
    %99 = vector.broadcast %85 : vector<1x8xf32> to vector<8x8xf32>
    %100 = arith.mulf %98, %99 : vector<8x8xf32>
    %101 = arith.subf %78, %100 : vector<8x8xf32>
    %102 = vector.shape_cast %88 : vector<8x1xi1> to vector<8x1xi1>
    %103 = vector.broadcast %102 : vector<8x1xi1> to vector<8x8xi1>
    %104 = vector.shape_cast %85 : vector<1x8xf32> to vector<1x8xf32>
    %105 = vector.broadcast %104 : vector<1x8xf32> to vector<8x8xf32>
    %106 = arith.select %103, %105, %101 : vector<8x8xi1>, vector<8x8xf32>
    %107 = vector.extract_strided_slice %97 {offsets = [3, 3], sizes = [1, 1], strides = [1, 1]} : vector<8x8xf32> to vector<1x1xf32>
    %108 = vector.extract_strided_slice %97 {offsets = [3, 0], sizes = [1, 8], strides = [1, 1]} : vector<8x8xf32> to vector<1x8xf32>
    %109 = vector.broadcast %107 : vector<1x1xf32> to vector<1x8xf32>
    %110 = arith.divf %108, %109 : vector<1x8xf32>
    %111 = vector.extract_strided_slice %106 {offsets = [3, 0], sizes = [1, 8], strides = [1, 1]} : vector<8x8xf32> to vector<1x8xf32>
    %112 = vector.broadcast %107 : vector<1x1xf32> to vector<1x8xf32>
    %113 = arith.divf %111, %112 : vector<1x8xf32>
    %114 = vector.extract_strided_slice %97 {offsets = [0, 3], sizes = [8, 1], strides = [1, 1]} : vector<8x8xf32> to vector<8x1xf32>
    %c3_i32 = arith.constant 3 : i32
    %115 = vector.broadcast %c3_i32 : i32 to vector<8x1xi32>
    %116 = arith.cmpi eq, %0, %115 : vector<8x1xi32>
    %117 = vector.broadcast %114 : vector<8x1xf32> to vector<8x8xf32>
    %118 = vector.broadcast %110 : vector<1x8xf32> to vector<8x8xf32>
    %119 = arith.mulf %117, %118 : vector<8x8xf32>
    %120 = arith.subf %97, %119 : vector<8x8xf32>
    %121 = vector.shape_cast %116 : vector<8x1xi1> to vector<8x1xi1>
    %122 = vector.broadcast %121 : vector<8x1xi1> to vector<8x8xi1>
    %123 = vector.shape_cast %110 : vector<1x8xf32> to vector<1x8xf32>
    %124 = vector.broadcast %123 : vector<1x8xf32> to vector<8x8xf32>
    %125 = arith.select %122, %124, %120 : vector<8x8xi1>, vector<8x8xf32>
    %126 = vector.broadcast %114 : vector<8x1xf32> to vector<8x8xf32>
    %127 = vector.broadcast %113 : vector<1x8xf32> to vector<8x8xf32>
    %128 = arith.mulf %126, %127 : vector<8x8xf32>
    %129 = arith.subf %106, %128 : vector<8x8xf32>
    %130 = vector.shape_cast %116 : vector<8x1xi1> to vector<8x1xi1>
    %131 = vector.broadcast %130 : vector<8x1xi1> to vector<8x8xi1>
    %132 = vector.shape_cast %113 : vector<1x8xf32> to vector<1x8xf32>
    %133 = vector.broadcast %132 : vector<1x8xf32> to vector<8x8xf32>
    %134 = arith.select %131, %133, %129 : vector<8x8xi1>, vector<8x8xf32>
    %135 = vector.extract_strided_slice %125 {offsets = [4, 4], sizes = [1, 1], strides = [1, 1]} : vector<8x8xf32> to vector<1x1xf32>
    %136 = vector.extract_strided_slice %125 {offsets = [4, 0], sizes = [1, 8], strides = [1, 1]} : vector<8x8xf32> to vector<1x8xf32>
    %137 = vector.broadcast %135 : vector<1x1xf32> to vector<1x8xf32>
    %138 = arith.divf %136, %137 : vector<1x8xf32>
    %139 = vector.extract_strided_slice %134 {offsets = [4, 0], sizes = [1, 8], strides = [1, 1]} : vector<8x8xf32> to vector<1x8xf32>
    %140 = vector.broadcast %135 : vector<1x1xf32> to vector<1x8xf32>
    %141 = arith.divf %139, %140 : vector<1x8xf32>
    %142 = vector.extract_strided_slice %125 {offsets = [0, 4], sizes = [8, 1], strides = [1, 1]} : vector<8x8xf32> to vector<8x1xf32>
    %c4_i32 = arith.constant 4 : i32
    %143 = vector.broadcast %c4_i32 : i32 to vector<8x1xi32>
    %144 = arith.cmpi eq, %0, %143 : vector<8x1xi32>
    %145 = vector.broadcast %142 : vector<8x1xf32> to vector<8x8xf32>
    %146 = vector.broadcast %138 : vector<1x8xf32> to vector<8x8xf32>
    %147 = arith.mulf %145, %146 : vector<8x8xf32>
    %148 = arith.subf %125, %147 : vector<8x8xf32>
    %149 = vector.shape_cast %144 : vector<8x1xi1> to vector<8x1xi1>
    %150 = vector.broadcast %149 : vector<8x1xi1> to vector<8x8xi1>
    %151 = vector.shape_cast %138 : vector<1x8xf32> to vector<1x8xf32>
    %152 = vector.broadcast %151 : vector<1x8xf32> to vector<8x8xf32>
    %153 = arith.select %150, %152, %148 : vector<8x8xi1>, vector<8x8xf32>
    %154 = vector.broadcast %142 : vector<8x1xf32> to vector<8x8xf32>
    %155 = vector.broadcast %141 : vector<1x8xf32> to vector<8x8xf32>
    %156 = arith.mulf %154, %155 : vector<8x8xf32>
    %157 = arith.subf %134, %156 : vector<8x8xf32>
    %158 = vector.shape_cast %144 : vector<8x1xi1> to vector<8x1xi1>
    %159 = vector.broadcast %158 : vector<8x1xi1> to vector<8x8xi1>
    %160 = vector.shape_cast %141 : vector<1x8xf32> to vector<1x8xf32>
    %161 = vector.broadcast %160 : vector<1x8xf32> to vector<8x8xf32>
    %162 = arith.select %159, %161, %157 : vector<8x8xi1>, vector<8x8xf32>
    %163 = vector.extract_strided_slice %153 {offsets = [5, 5], sizes = [1, 1], strides = [1, 1]} : vector<8x8xf32> to vector<1x1xf32>
    %164 = vector.extract_strided_slice %153 {offsets = [5, 0], sizes = [1, 8], strides = [1, 1]} : vector<8x8xf32> to vector<1x8xf32>
    %165 = vector.broadcast %163 : vector<1x1xf32> to vector<1x8xf32>
    %166 = arith.divf %164, %165 : vector<1x8xf32>
    %167 = vector.extract_strided_slice %162 {offsets = [5, 0], sizes = [1, 8], strides = [1, 1]} : vector<8x8xf32> to vector<1x8xf32>
    %168 = vector.broadcast %163 : vector<1x1xf32> to vector<1x8xf32>
    %169 = arith.divf %167, %168 : vector<1x8xf32>
    %170 = vector.extract_strided_slice %153 {offsets = [0, 5], sizes = [8, 1], strides = [1, 1]} : vector<8x8xf32> to vector<8x1xf32>
    %c5_i32 = arith.constant 5 : i32
    %171 = vector.broadcast %c5_i32 : i32 to vector<8x1xi32>
    %172 = arith.cmpi eq, %0, %171 : vector<8x1xi32>
    %173 = vector.broadcast %170 : vector<8x1xf32> to vector<8x8xf32>
    %174 = vector.broadcast %166 : vector<1x8xf32> to vector<8x8xf32>
    %175 = arith.mulf %173, %174 : vector<8x8xf32>
    %176 = arith.subf %153, %175 : vector<8x8xf32>
    %177 = vector.shape_cast %172 : vector<8x1xi1> to vector<8x1xi1>
    %178 = vector.broadcast %177 : vector<8x1xi1> to vector<8x8xi1>
    %179 = vector.shape_cast %166 : vector<1x8xf32> to vector<1x8xf32>
    %180 = vector.broadcast %179 : vector<1x8xf32> to vector<8x8xf32>
    %181 = arith.select %178, %180, %176 : vector<8x8xi1>, vector<8x8xf32>
    %182 = vector.broadcast %170 : vector<8x1xf32> to vector<8x8xf32>
    %183 = vector.broadcast %169 : vector<1x8xf32> to vector<8x8xf32>
    %184 = arith.mulf %182, %183 : vector<8x8xf32>
    %185 = arith.subf %162, %184 : vector<8x8xf32>
    %186 = vector.shape_cast %172 : vector<8x1xi1> to vector<8x1xi1>
    %187 = vector.broadcast %186 : vector<8x1xi1> to vector<8x8xi1>
    %188 = vector.shape_cast %169 : vector<1x8xf32> to vector<1x8xf32>
    %189 = vector.broadcast %188 : vector<1x8xf32> to vector<8x8xf32>
    %190 = arith.select %187, %189, %185 : vector<8x8xi1>, vector<8x8xf32>
    %191 = vector.extract_strided_slice %181 {offsets = [6, 6], sizes = [1, 1], strides = [1, 1]} : vector<8x8xf32> to vector<1x1xf32>
    %192 = vector.extract_strided_slice %181 {offsets = [6, 0], sizes = [1, 8], strides = [1, 1]} : vector<8x8xf32> to vector<1x8xf32>
    %193 = vector.broadcast %191 : vector<1x1xf32> to vector<1x8xf32>
    %194 = arith.divf %192, %193 : vector<1x8xf32>
    %195 = vector.extract_strided_slice %190 {offsets = [6, 0], sizes = [1, 8], strides = [1, 1]} : vector<8x8xf32> to vector<1x8xf32>
    %196 = vector.broadcast %191 : vector<1x1xf32> to vector<1x8xf32>
    %197 = arith.divf %195, %196 : vector<1x8xf32>
    %198 = vector.extract_strided_slice %181 {offsets = [0, 6], sizes = [8, 1], strides = [1, 1]} : vector<8x8xf32> to vector<8x1xf32>
    %c6_i32 = arith.constant 6 : i32
    %199 = vector.broadcast %c6_i32 : i32 to vector<8x1xi32>
    %200 = arith.cmpi eq, %0, %199 : vector<8x1xi32>
    %201 = vector.broadcast %198 : vector<8x1xf32> to vector<8x8xf32>
    %202 = vector.broadcast %194 : vector<1x8xf32> to vector<8x8xf32>
    %203 = arith.mulf %201, %202 : vector<8x8xf32>
    %204 = arith.subf %181, %203 : vector<8x8xf32>
    %205 = vector.shape_cast %200 : vector<8x1xi1> to vector<8x1xi1>
    %206 = vector.broadcast %205 : vector<8x1xi1> to vector<8x8xi1>
    %207 = vector.shape_cast %194 : vector<1x8xf32> to vector<1x8xf32>
    %208 = vector.broadcast %207 : vector<1x8xf32> to vector<8x8xf32>
    %209 = arith.select %206, %208, %204 : vector<8x8xi1>, vector<8x8xf32>
    %210 = vector.broadcast %198 : vector<8x1xf32> to vector<8x8xf32>
    %211 = vector.broadcast %197 : vector<1x8xf32> to vector<8x8xf32>
    %212 = arith.mulf %210, %211 : vector<8x8xf32>
    %213 = arith.subf %190, %212 : vector<8x8xf32>
    %214 = vector.shape_cast %200 : vector<8x1xi1> to vector<8x1xi1>
    %215 = vector.broadcast %214 : vector<8x1xi1> to vector<8x8xi1>
    %216 = vector.shape_cast %197 : vector<1x8xf32> to vector<1x8xf32>
    %217 = vector.broadcast %216 : vector<1x8xf32> to vector<8x8xf32>
    %218 = arith.select %215, %217, %213 : vector<8x8xi1>, vector<8x8xf32>
    %219 = vector.extract_strided_slice %209 {offsets = [7, 7], sizes = [1, 1], strides = [1, 1]} : vector<8x8xf32> to vector<1x1xf32>
    %220 = vector.extract_strided_slice %218 {offsets = [7, 0], sizes = [1, 8], strides = [1, 1]} : vector<8x8xf32> to vector<1x8xf32>
    %221 = vector.broadcast %219 : vector<1x1xf32> to vector<1x8xf32>
    %222 = arith.divf %220, %221 : vector<1x8xf32>
    %223 = vector.extract_strided_slice %209 {offsets = [0, 7], sizes = [8, 1], strides = [1, 1]} : vector<8x8xf32> to vector<8x1xf32>
    %c7_i32 = arith.constant 7 : i32
    %224 = vector.broadcast %c7_i32 : i32 to vector<8x1xi32>
    %225 = arith.cmpi eq, %0, %224 : vector<8x1xi32>
    %226 = vector.broadcast %223 : vector<8x1xf32> to vector<8x8xf32>
    %227 = vector.broadcast %222 : vector<1x8xf32> to vector<8x8xf32>
    %228 = arith.mulf %226, %227 : vector<8x8xf32>
    %229 = arith.subf %218, %228 : vector<8x8xf32>
    %230 = vector.shape_cast %225 : vector<8x1xi1> to vector<8x1xi1>
    %231 = vector.broadcast %230 : vector<8x1xi1> to vector<8x8xi1>
    %232 = vector.shape_cast %222 : vector<1x8xf32> to vector<1x8xf32>
    %233 = vector.broadcast %232 : vector<1x8xf32> to vector<8x8xf32>
    %234 = arith.select %231, %233, %229 : vector<8x8xi1>, vector<8x8xf32>
    %cst_7 = arith.constant dense<0.000000e+00> : vector<12x8xf32>
    %235 = tpu.matmul %7, %234, %cst_7 {dimension_numbers = #tpu.dot_dimension_numbers<[1], [0], [0], [1], [0, 0, 1, 1], [], []>} : vector<12x8xf32>, vector<8x8xf32>, vector<12x8xf32> -> vector<12x8xf32>
    %236 = vector.extract_strided_slice %7 {offsets = [0, 0], sizes = [1, 8], strides = [1, 1]} : vector<12x8xf32> to vector<1x8xf32>
    %237 = vector.extract_strided_slice %235 {offsets = [0, 0], sizes = [11, 8], strides = [1, 1]} : vector<12x8xf32> to vector<11x8xf32>
    %238 = tpu.concatenate %236, %237 in 0 : vector<1x8xf32>, vector<11x8xf32> -> vector<12x8xf32>
    %c0_8 = arith.constant 0 : index
    %c0_9 = arith.constant 0 : index
    %c0_10 = arith.constant 0 : index
    %239 = vector.load %arg2[%c0_8, %c0_9, %c0_10] : memref<2x12x8xf32, #tpu.memory_space<vmem>>, vector<1x12x8xf32>
    %240 = vector.shape_cast %239 : vector<1x12x8xf32> to vector<12x8xf32>
    %241 = vector.shape_cast %238 : vector<12x8xf32> to vector<1x12x8xf32>
    tpu.vector_store %arg2[%c0_8, %c0_9, %c0_10], %241 {strides = array<i32>} : memref<2x12x8xf32, #tpu.memory_space<vmem>>, vector<1x12x8xf32>,
    %242 = vector.extract_strided_slice %235 {offsets = [11, 0], sizes = [1, 8], strides = [1, 1]} : vector<12x8xf32> to vector<1x8xf32>
    %c0_11 = arith.constant 0 : index
    %c0_12 = arith.constant 0 : index
    %c0_13 = arith.constant 0 : index
    %243 = vector.load %arg3[%c0_11, %c0_12, %c0_13] : memref<2x1x8xf32, #tpu.memory_space<vmem>>, vector<1x1x8xf32>
    %244 = vector.shape_cast %243 : vector<1x1x8xf32> to vector<1x8xf32>
    %245 = vector.shape_cast %242 : vector<1x8xf32> to vector<1x1x8xf32>
    tpu.vector_store %arg3[%c0_11, %c0_12, %c0_13], %245 {strides = array<i32>} : memref<2x1x8xf32, #tpu.memory_space<vmem>>, vector<1x1x8xf32>,
    %c1 = arith.constant 1 : index
    %c0_14 = arith.constant 0 : index
    %c0_15 = arith.constant 0 : index
    %246 = vector.load %arg1[%c1, %c0_14, %c0_15] : memref<2x12x8xf32, #tpu.memory_space<vmem>>, vector<1x12x8xf32>
    %247 = vector.shape_cast %246 : vector<1x12x8xf32> to vector<12x8xf32>
    %248 = vector.extract_strided_slice %247 {offsets = [0, 0], sizes = [11, 8], strides = [1, 1]} : vector<12x8xf32> to vector<11x8xf32>
    %249 = vector.extract_strided_slice %247 {offsets = [1, 0], sizes = [11, 8], strides = [1, 1]} : vector<12x8xf32> to vector<11x8xf32>
    %cst_16 = arith.constant dense<0.000000e+00> : vector<8x8xf32>
    %250 = tpu.matmul %248, %248, %cst_16 {dimension_numbers = #tpu.dot_dimension_numbers<[0], [0], [1], [1], [0, 1, 1, 1], [], []>} : vector<11x8xf32>, vector<11x8xf32>, vector<8x8xf32> -> vector<8x8xf32>
    %cst_17 = arith.constant dense<0.000000e+00> : vector<8x8xf32>
    %251 = tpu.matmul %248, %249, %cst_17 {dimension_numbers = #tpu.dot_dimension_numbers<[0], [0], [1], [1], [0, 1, 1, 1], [], []>} : vector<11x8xf32>, vector<11x8xf32>, vector<8x8xf32> -> vector<8x8xf32>
    %252 = arith.mulf %250, %5 : vector<8x8xf32>
    %253 = vector.shape_cast %252 : vector<8x8xf32> to vector<1x8x8xf32>
    %cst_18 = arith.constant dense<0.000000e+00> : vector<1xf32>
    %254 = vector.multi_reduction <add>, %253, %cst_18 [1, 2] : vector<1x8x8xf32> to vector<1xf32>
    %255 = vector.shape_cast %254 : vector<1xf32> to vector<1x1x1xf32>
    %256 = vector.extract %255[0, 0, 0] : f32 from vector<1x1x1xf32>
    %cst_19 = arith.constant 8.000000e+00 : f32
    %257 = arith.divf %256, %cst_19 : f32
    %cst_20 = arith.constant 9.99999997E-7 : f32
    %258 = arith.mulf %cst_20, %257 : f32
    %cst_21 = arith.constant 1.000000e-10 : f32
    %259 = arith.addf %258, %cst_21 : f32
    %260 = vector.broadcast %259 : f32 to vector<8x8xf32>
    %261 = arith.mulf %260, %5 : vector<8x8xf32>
    %262 = arith.addf %250, %261 : vector<8x8xf32>
    %263 = vector.extract_strided_slice %262 {offsets = [0, 0], sizes = [1, 1], strides = [1, 1]} : vector<8x8xf32> to vector<1x1xf32>
    %264 = vector.extract_strided_slice %262 {offsets = [0, 0], sizes = [1, 8], strides = [1, 1]} : vector<8x8xf32> to vector<1x8xf32>
    %265 = vector.broadcast %263 : vector<1x1xf32> to vector<1x8xf32>
    %266 = arith.divf %264, %265 : vector<1x8xf32>
    %267 = vector.extract_strided_slice %251 {offsets = [0, 0], sizes = [1, 8], strides = [1, 1]} : vector<8x8xf32> to vector<1x8xf32>
    %268 = vector.broadcast %263 : vector<1x1xf32> to vector<1x8xf32>
    %269 = arith.divf %267, %268 : vector<1x8xf32>
    %270 = vector.extract_strided_slice %262 {offsets = [0, 0], sizes = [8, 1], strides = [1, 1]} : vector<8x8xf32> to vector<8x1xf32>
    %c0_i32_22 = arith.constant 0 : i32
    %271 = vector.broadcast %c0_i32_22 : i32 to vector<8x1xi32>
    %272 = arith.cmpi eq, %0, %271 : vector<8x1xi32>
    %273 = vector.broadcast %270 : vector<8x1xf32> to vector<8x8xf32>
    %274 = vector.broadcast %266 : vector<1x8xf32> to vector<8x8xf32>
    %275 = arith.mulf %273, %274 : vector<8x8xf32>
    %276 = arith.subf %262, %275 : vector<8x8xf32>
    %277 = vector.shape_cast %272 : vector<8x1xi1> to vector<8x1xi1>
    %278 = vector.broadcast %277 : vector<8x1xi1> to vector<8x8xi1>
    %279 = vector.shape_cast %266 : vector<1x8xf32> to vector<1x8xf32>
    %280 = vector.broadcast %279 : vector<1x8xf32> to vector<8x8xf32>
    %281 = arith.select %278, %280, %276 : vector<8x8xi1>, vector<8x8xf32>
    %282 = vector.broadcast %270 : vector<8x1xf32> to vector<8x8xf32>
    %283 = vector.broadcast %269 : vector<1x8xf32> to vector<8x8xf32>
    %284 = arith.mulf %282, %283 : vector<8x8xf32>
    %285 = arith.subf %251, %284 : vector<8x8xf32>
    %286 = vector.shape_cast %272 : vector<8x1xi1> to vector<8x1xi1>
    %287 = vector.broadcast %286 : vector<8x1xi1> to vector<8x8xi1>
    %288 = vector.shape_cast %269 : vector<1x8xf32> to vector<1x8xf32>
    %289 = vector.broadcast %288 : vector<1x8xf32> to vector<8x8xf32>
    %290 = arith.select %287, %289, %285 : vector<8x8xi1>, vector<8x8xf32>
    %291 = vector.extract_strided_slice %281 {offsets = [1, 1], sizes = [1, 1], strides = [1, 1]} : vector<8x8xf32> to vector<1x1xf32>
    %292 = vector.extract_strided_slice %281 {offsets = [1, 0], sizes = [1, 8], strides = [1, 1]} : vector<8x8xf32> to vector<1x8xf32>
    %293 = vector.broadcast %291 : vector<1x1xf32> to vector<1x8xf32>
    %294 = arith.divf %292, %293 : vector<1x8xf32>
    %295 = vector.extract_strided_slice %290 {offsets = [1, 0], sizes = [1, 8], strides = [1, 1]} : vector<8x8xf32> to vector<1x8xf32>
    %296 = vector.broadcast %291 : vector<1x1xf32> to vector<1x8xf32>
    %297 = arith.divf %295, %296 : vector<1x8xf32>
    %298 = vector.extract_strided_slice %281 {offsets = [0, 1], sizes = [8, 1], strides = [1, 1]} : vector<8x8xf32> to vector<8x1xf32>
    %c1_i32_23 = arith.constant 1 : i32
    %299 = vector.broadcast %c1_i32_23 : i32 to vector<8x1xi32>
    %300 = arith.cmpi eq, %0, %299 : vector<8x1xi32>
    %301 = vector.broadcast %298 : vector<8x1xf32> to vector<8x8xf32>
    %302 = vector.broadcast %294 : vector<1x8xf32> to vector<8x8xf32>
    %303 = arith.mulf %301, %302 : vector<8x8xf32>
    %304 = arith.subf %281, %303 : vector<8x8xf32>
    %305 = vector.shape_cast %300 : vector<8x1xi1> to vector<8x1xi1>
    %306 = vector.broadcast %305 : vector<8x1xi1> to vector<8x8xi1>
    %307 = vector.shape_cast %294 : vector<1x8xf32> to vector<1x8xf32>
    %308 = vector.broadcast %307 : vector<1x8xf32> to vector<8x8xf32>
    %309 = arith.select %306, %308, %304 : vector<8x8xi1>, vector<8x8xf32>
    %310 = vector.broadcast %298 : vector<8x1xf32> to vector<8x8xf32>
    %311 = vector.broadcast %297 : vector<1x8xf32> to vector<8x8xf32>
    %312 = arith.mulf %310, %311 : vector<8x8xf32>
    %313 = arith.subf %290, %312 : vector<8x8xf32>
    %314 = vector.shape_cast %300 : vector<8x1xi1> to vector<8x1xi1>
    %315 = vector.broadcast %314 : vector<8x1xi1> to vector<8x8xi1>
    %316 = vector.shape_cast %297 : vector<1x8xf32> to vector<1x8xf32>
    %317 = vector.broadcast %316 : vector<1x8xf32> to vector<8x8xf32>
    %318 = arith.select %315, %317, %313 : vector<8x8xi1>, vector<8x8xf32>
    %319 = vector.extract_strided_slice %309 {offsets = [2, 2], sizes = [1, 1], strides = [1, 1]} : vector<8x8xf32> to vector<1x1xf32>
    %320 = vector.extract_strided_slice %309 {offsets = [2, 0], sizes = [1, 8], strides = [1, 1]} : vector<8x8xf32> to vector<1x8xf32>
    %321 = vector.broadcast %319 : vector<1x1xf32> to vector<1x8xf32>
    %322 = arith.divf %320, %321 : vector<1x8xf32>
    %323 = vector.extract_strided_slice %318 {offsets = [2, 0], sizes = [1, 8], strides = [1, 1]} : vector<8x8xf32> to vector<1x8xf32>
    %324 = vector.broadcast %319 : vector<1x1xf32> to vector<1x8xf32>
    %325 = arith.divf %323, %324 : vector<1x8xf32>
    %326 = vector.extract_strided_slice %309 {offsets = [0, 2], sizes = [8, 1], strides = [1, 1]} : vector<8x8xf32> to vector<8x1xf32>
    %c2_i32_24 = arith.constant 2 : i32
    %327 = vector.broadcast %c2_i32_24 : i32 to vector<8x1xi32>
    %328 = arith.cmpi eq, %0, %327 : vector<8x1xi32>
    %329 = vector.broadcast %326 : vector<8x1xf32> to vector<8x8xf32>
    %330 = vector.broadcast %322 : vector<1x8xf32> to vector<8x8xf32>
    %331 = arith.mulf %329, %330 : vector<8x8xf32>
    %332 = arith.subf %309, %331 : vector<8x8xf32>
    %333 = vector.shape_cast %328 : vector<8x1xi1> to vector<8x1xi1>
    %334 = vector.broadcast %333 : vector<8x1xi1> to vector<8x8xi1>
    %335 = vector.shape_cast %322 : vector<1x8xf32> to vector<1x8xf32>
    %336 = vector.broadcast %335 : vector<1x8xf32> to vector<8x8xf32>
    %337 = arith.select %334, %336, %332 : vector<8x8xi1>, vector<8x8xf32>
    %338 = vector.broadcast %326 : vector<8x1xf32> to vector<8x8xf32>
    %339 = vector.broadcast %325 : vector<1x8xf32> to vector<8x8xf32>
    %340 = arith.mulf %338, %339 : vector<8x8xf32>
    %341 = arith.subf %318, %340 : vector<8x8xf32>
    %342 = vector.shape_cast %328 : vector<8x1xi1> to vector<8x1xi1>
    %343 = vector.broadcast %342 : vector<8x1xi1> to vector<8x8xi1>
    %344 = vector.shape_cast %325 : vector<1x8xf32> to vector<1x8xf32>
    %345 = vector.broadcast %344 : vector<1x8xf32> to vector<8x8xf32>
    %346 = arith.select %343, %345, %341 : vector<8x8xi1>, vector<8x8xf32>
    %347 = vector.extract_strided_slice %337 {offsets = [3, 3], sizes = [1, 1], strides = [1, 1]} : vector<8x8xf32> to vector<1x1xf32>
    %348 = vector.extract_strided_slice %337 {offsets = [3, 0], sizes = [1, 8], strides = [1, 1]} : vector<8x8xf32> to vector<1x8xf32>
    %349 = vector.broadcast %347 : vector<1x1xf32> to vector<1x8xf32>
    %350 = arith.divf %348, %349 : vector<1x8xf32>
    %351 = vector.extract_strided_slice %346 {offsets = [3, 0], sizes = [1, 8], strides = [1, 1]} : vector<8x8xf32> to vector<1x8xf32>
    %352 = vector.broadcast %347 : vector<1x1xf32> to vector<1x8xf32>
    %353 = arith.divf %351, %352 : vector<1x8xf32>
    %354 = vector.extract_strided_slice %337 {offsets = [0, 3], sizes = [8, 1], strides = [1, 1]} : vector<8x8xf32> to vector<8x1xf32>
    %c3_i32_25 = arith.constant 3 : i32
    %355 = vector.broadcast %c3_i32_25 : i32 to vector<8x1xi32>
    %356 = arith.cmpi eq, %0, %355 : vector<8x1xi32>
    %357 = vector.broadcast %354 : vector<8x1xf32> to vector<8x8xf32>
    %358 = vector.broadcast %350 : vector<1x8xf32> to vector<8x8xf32>
    %359 = arith.mulf %357, %358 : vector<8x8xf32>
    %360 = arith.subf %337, %359 : vector<8x8xf32>
    %361 = vector.shape_cast %356 : vector<8x1xi1> to vector<8x1xi1>
    %362 = vector.broadcast %361 : vector<8x1xi1> to vector<8x8xi1>
    %363 = vector.shape_cast %350 : vector<1x8xf32> to vector<1x8xf32>
    %364 = vector.broadcast %363 : vector<1x8xf32> to vector<8x8xf32>
    %365 = arith.select %362, %364, %360 : vector<8x8xi1>, vector<8x8xf32>
    %366 = vector.broadcast %354 : vector<8x1xf32> to vector<8x8xf32>
    %367 = vector.broadcast %353 : vector<1x8xf32> to vector<8x8xf32>
    %368 = arith.mulf %366, %367 : vector<8x8xf32>
    %369 = arith.subf %346, %368 : vector<8x8xf32>
    %370 = vector.shape_cast %356 : vector<8x1xi1> to vector<8x1xi1>
    %371 = vector.broadcast %370 : vector<8x1xi1> to vector<8x8xi1>
    %372 = vector.shape_cast %353 : vector<1x8xf32> to vector<1x8xf32>
    %373 = vector.broadcast %372 : vector<1x8xf32> to vector<8x8xf32>
    %374 = arith.select %371, %373, %369 : vector<8x8xi1>, vector<8x8xf32>
    %375 = vector.extract_strided_slice %365 {offsets = [4, 4], sizes = [1, 1], strides = [1, 1]} : vector<8x8xf32> to vector<1x1xf32>
    %376 = vector.extract_strided_slice %365 {offsets = [4, 0], sizes = [1, 8], strides = [1, 1]} : vector<8x8xf32> to vector<1x8xf32>
    %377 = vector.broadcast %375 : vector<1x1xf32> to vector<1x8xf32>
    %378 = arith.divf %376, %377 : vector<1x8xf32>
    %379 = vector.extract_strided_slice %374 {offsets = [4, 0], sizes = [1, 8], strides = [1, 1]} : vector<8x8xf32> to vector<1x8xf32>
    %380 = vector.broadcast %375 : vector<1x1xf32> to vector<1x8xf32>
    %381 = arith.divf %379, %380 : vector<1x8xf32>
    %382 = vector.extract_strided_slice %365 {offsets = [0, 4], sizes = [8, 1], strides = [1, 1]} : vector<8x8xf32> to vector<8x1xf32>
    %c4_i32_26 = arith.constant 4 : i32
    %383 = vector.broadcast %c4_i32_26 : i32 to vector<8x1xi32>
    %384 = arith.cmpi eq, %0, %383 : vector<8x1xi32>
    %385 = vector.broadcast %382 : vector<8x1xf32> to vector<8x8xf32>
    %386 = vector.broadcast %378 : vector<1x8xf32> to vector<8x8xf32>
    %387 = arith.mulf %385, %386 : vector<8x8xf32>
    %388 = arith.subf %365, %387 : vector<8x8xf32>
    %389 = vector.shape_cast %384 : vector<8x1xi1> to vector<8x1xi1>
    %390 = vector.broadcast %389 : vector<8x1xi1> to vector<8x8xi1>
    %391 = vector.shape_cast %378 : vector<1x8xf32> to vector<1x8xf32>
    %392 = vector.broadcast %391 : vector<1x8xf32> to vector<8x8xf32>
    %393 = arith.select %390, %392, %388 : vector<8x8xi1>, vector<8x8xf32>
    %394 = vector.broadcast %382 : vector<8x1xf32> to vector<8x8xf32>
    %395 = vector.broadcast %381 : vector<1x8xf32> to vector<8x8xf32>
    %396 = arith.mulf %394, %395 : vector<8x8xf32>
    %397 = arith.subf %374, %396 : vector<8x8xf32>
    %398 = vector.shape_cast %384 : vector<8x1xi1> to vector<8x1xi1>
    %399 = vector.broadcast %398 : vector<8x1xi1> to vector<8x8xi1>
    %400 = vector.shape_cast %381 : vector<1x8xf32> to vector<1x8xf32>
    %401 = vector.broadcast %400 : vector<1x8xf32> to vector<8x8xf32>
    %402 = arith.select %399, %401, %397 : vector<8x8xi1>, vector<8x8xf32>
    %403 = vector.extract_strided_slice %393 {offsets = [5, 5], sizes = [1, 1], strides = [1, 1]} : vector<8x8xf32> to vector<1x1xf32>
    %404 = vector.extract_strided_slice %393 {offsets = [5, 0], sizes = [1, 8], strides = [1, 1]} : vector<8x8xf32> to vector<1x8xf32>
    %405 = vector.broadcast %403 : vector<1x1xf32> to vector<1x8xf32>
    %406 = arith.divf %404, %405 : vector<1x8xf32>
    %407 = vector.extract_strided_slice %402 {offsets = [5, 0], sizes = [1, 8], strides = [1, 1]} : vector<8x8xf32> to vector<1x8xf32>
    %408 = vector.broadcast %403 : vector<1x1xf32> to vector<1x8xf32>
    %409 = arith.divf %407, %408 : vector<1x8xf32>
    %410 = vector.extract_strided_slice %393 {offsets = [0, 5], sizes = [8, 1], strides = [1, 1]} : vector<8x8xf32> to vector<8x1xf32>
    %c5_i32_27 = arith.constant 5 : i32
    %411 = vector.broadcast %c5_i32_27 : i32 to vector<8x1xi32>
    %412 = arith.cmpi eq, %0, %411 : vector<8x1xi32>
    %413 = vector.broadcast %410 : vector<8x1xf32> to vector<8x8xf32>
    %414 = vector.broadcast %406 : vector<1x8xf32> to vector<8x8xf32>
    %415 = arith.mulf %413, %414 : vector<8x8xf32>
    %416 = arith.subf %393, %415 : vector<8x8xf32>
    %417 = vector.shape_cast %412 : vector<8x1xi1> to vector<8x1xi1>
    %418 = vector.broadcast %417 : vector<8x1xi1> to vector<8x8xi1>
    %419 = vector.shape_cast %406 : vector<1x8xf32> to vector<1x8xf32>
    %420 = vector.broadcast %419 : vector<1x8xf32> to vector<8x8xf32>
    %421 = arith.select %418, %420, %416 : vector<8x8xi1>, vector<8x8xf32>
    %422 = vector.broadcast %410 : vector<8x1xf32> to vector<8x8xf32>
    %423 = vector.broadcast %409 : vector<1x8xf32> to vector<8x8xf32>
    %424 = arith.mulf %422, %423 : vector<8x8xf32>
    %425 = arith.subf %402, %424 : vector<8x8xf32>
    %426 = vector.shape_cast %412 : vector<8x1xi1> to vector<8x1xi1>
    %427 = vector.broadcast %426 : vector<8x1xi1> to vector<8x8xi1>
    %428 = vector.shape_cast %409 : vector<1x8xf32> to vector<1x8xf32>
    %429 = vector.broadcast %428 : vector<1x8xf32> to vector<8x8xf32>
    %430 = arith.select %427, %429, %425 : vector<8x8xi1>, vector<8x8xf32>
    %431 = vector.extract_strided_slice %421 {offsets = [6, 6], sizes = [1, 1], strides = [1, 1]} : vector<8x8xf32> to vector<1x1xf32>
    %432 = vector.extract_strided_slice %421 {offsets = [6, 0], sizes = [1, 8], strides = [1, 1]} : vector<8x8xf32> to vector<1x8xf32>
    %433 = vector.broadcast %431 : vector<1x1xf32> to vector<1x8xf32>
    %434 = arith.divf %432, %433 : vector<1x8xf32>
    %435 = vector.extract_strided_slice %430 {offsets = [6, 0], sizes = [1, 8], strides = [1, 1]} : vector<8x8xf32> to vector<1x8xf32>
    %436 = vector.broadcast %431 : vector<1x1xf32> to vector<1x8xf32>
    %437 = arith.divf %435, %436 : vector<1x8xf32>
    %438 = vector.extract_strided_slice %421 {offsets = [0, 6], sizes = [8, 1], strides = [1, 1]} : vector<8x8xf32> to vector<8x1xf32>
    %c6_i32_28 = arith.constant 6 : i32
    %439 = vector.broadcast %c6_i32_28 : i32 to vector<8x1xi32>
    %440 = arith.cmpi eq, %0, %439 : vector<8x1xi32>
    %441 = vector.broadcast %438 : vector<8x1xf32> to vector<8x8xf32>
    %442 = vector.broadcast %434 : vector<1x8xf32> to vector<8x8xf32>
    %443 = arith.mulf %441, %442 : vector<8x8xf32>
    %444 = arith.subf %421, %443 : vector<8x8xf32>
    %445 = vector.shape_cast %440 : vector<8x1xi1> to vector<8x1xi1>
    %446 = vector.broadcast %445 : vector<8x1xi1> to vector<8x8xi1>
    %447 = vector.shape_cast %434 : vector<1x8xf32> to vector<1x8xf32>
    %448 = vector.broadcast %447 : vector<1x8xf32> to vector<8x8xf32>
    %449 = arith.select %446, %448, %444 : vector<8x8xi1>, vector<8x8xf32>
    %450 = vector.broadcast %438 : vector<8x1xf32> to vector<8x8xf32>
    %451 = vector.broadcast %437 : vector<1x8xf32> to vector<8x8xf32>
    %452 = arith.mulf %450, %451 : vector<8x8xf32>
    %453 = arith.subf %430, %452 : vector<8x8xf32>
    %454 = vector.shape_cast %440 : vector<8x1xi1> to vector<8x1xi1>
    %455 = vector.broadcast %454 : vector<8x1xi1> to vector<8x8xi1>
    %456 = vector.shape_cast %437 : vector<1x8xf32> to vector<1x8xf32>
    %457 = vector.broadcast %456 : vector<1x8xf32> to vector<8x8xf32>
    %458 = arith.select %455, %457, %453 : vector<8x8xi1>, vector<8x8xf32>
    %459 = vector.extract_strided_slice %449 {offsets = [7, 7], sizes = [1, 1], strides = [1, 1]} : vector<8x8xf32> to vector<1x1xf32>
    %460 = vector.extract_strided_slice %458 {offsets = [7, 0], sizes = [1, 8], strides = [1, 1]} : vector<8x8xf32> to vector<1x8xf32>
    %461 = vector.broadcast %459 : vector<1x1xf32> to vector<1x8xf32>
    %462 = arith.divf %460, %461 : vector<1x8xf32>
    %463 = vector.extract_strided_slice %449 {offsets = [0, 7], sizes = [8, 1], strides = [1, 1]} : vector<8x8xf32> to vector<8x1xf32>
    %c7_i32_29 = arith.constant 7 : i32
    %464 = vector.broadcast %c7_i32_29 : i32 to vector<8x1xi32>
    %465 = arith.cmpi eq, %0, %464 : vector<8x1xi32>
    %466 = vector.broadcast %463 : vector<8x1xf32> to vector<8x8xf32>
    %467 = vector.broadcast %462 : vector<1x8xf32> to vector<8x8xf32>
    %468 = arith.mulf %466, %467 : vector<8x8xf32>
    %469 = arith.subf %458, %468 : vector<8x8xf32>
    %470 = vector.shape_cast %465 : vector<8x1xi1> to vector<8x1xi1>
    %471 = vector.broadcast %470 : vector<8x1xi1> to vector<8x8xi1>
    %472 = vector.shape_cast %462 : vector<1x8xf32> to vector<1x8xf32>
    %473 = vector.broadcast %472 : vector<1x8xf32> to vector<8x8xf32>
    %474 = arith.select %471, %473, %469 : vector<8x8xi1>, vector<8x8xf32>
    %cst_30 = arith.constant dense<0.000000e+00> : vector<12x8xf32>
    %475 = tpu.matmul %247, %474, %cst_30 {dimension_numbers = #tpu.dot_dimension_numbers<[1], [0], [0], [1], [0, 0, 1, 1], [], []>} : vector<12x8xf32>, vector<8x8xf32>, vector<12x8xf32> -> vector<12x8xf32>
    %476 = vector.extract_strided_slice %247 {offsets = [0, 0], sizes = [1, 8], strides = [1, 1]} : vector<12x8xf32> to vector<1x8xf32>
    %477 = vector.extract_strided_slice %475 {offsets = [0, 0], sizes = [11, 8], strides = [1, 1]} : vector<12x8xf32> to vector<11x8xf32>
    %478 = tpu.concatenate %476, %477 in 0 : vector<1x8xf32>, vector<11x8xf32> -> vector<12x8xf32>
    %c1_31 = arith.constant 1 : index
    %c0_32 = arith.constant 0 : index
    %c0_33 = arith.constant 0 : index
    %479 = vector.load %arg2[%c1_31, %c0_32, %c0_33] : memref<2x12x8xf32, #tpu.memory_space<vmem>>, vector<1x12x8xf32>
    %480 = vector.shape_cast %479 : vector<1x12x8xf32> to vector<12x8xf32>
    %481 = vector.shape_cast %478 : vector<12x8xf32> to vector<1x12x8xf32>
    tpu.vector_store %arg2[%c1_31, %c0_32, %c0_33], %481 {strides = array<i32>} : memref<2x12x8xf32, #tpu.memory_space<vmem>>, vector<1x12x8xf32>,
    %482 = vector.extract_strided_slice %475 {offsets = [11, 0], sizes = [1, 8], strides = [1, 1]} : vector<12x8xf32> to vector<1x8xf32>
    %c1_34 = arith.constant 1 : index
    %c0_35 = arith.constant 0 : index
    %c0_36 = arith.constant 0 : index
    %483 = vector.load %arg3[%c1_34, %c0_35, %c0_36] : memref<2x1x8xf32, #tpu.memory_space<vmem>>, vector<1x1x8xf32>
    %484 = vector.shape_cast %483 : vector<1x1x8xf32> to vector<1x8xf32>
    %485 = vector.shape_cast %482 : vector<1x8xf32> to vector<1x1x8xf32>
    tpu.vector_store %arg3[%c1_34, %c0_35, %c0_36], %485 {strides = array<i32>} : memref<2x1x8xf32, #tpu.memory_space<vmem>>, vector<1x1x8xf32>,
    return
  }
  func.func @transform_0(%arg0: i32) -> (i32, i32, i32) {
    %c0_i32 = arith.constant 0 : i32
    %c0_i32_0 = arith.constant 0 : i32
    %c0_i32_1 = arith.constant 0 : i32
    %c0_i32_2 = arith.constant 0 : i32
    return %c0_i32, %c0_i32_0, %c0_i32_1 : i32, i32, i32
  }
  func.func @transform_1(%arg0: i32) -> (i32, i32, i32) {
    %c0_i32 = arith.constant 0 : i32
    %c0_i32_0 = arith.constant 0 : i32
    %c0_i32_1 = arith.constant 0 : i32
    %c0_i32_2 = arith.constant 0 : i32
    return %c0_i32, %c0_i32_0, %c0_i32_1 : i32, i32, i32
  }
  func.func @transform_2(%arg0: i32) -> (i32, i32, i32) {
    %c0_i32 = arith.constant 0 : i32
    %c0_i32_0 = arith.constant 0 : i32
    %c0_i32_1 = arith.constant 0 : i32
    %c0_i32_2 = arith.constant 0 : i32
    return %c0_i32, %c0_i32_0, %c0_i32_1 : i32, i32, i32
  }
}

</mosaic_0001>

<llo_original>
// kernel: kp_layer_forward.1
$region0: #{kp_layer_forward.1}
  #allocation0 [shape = 'u32[]', space=smem, size = 0x4, offset = 0x4, fixed_abs, tag = 'smem constant byte address 0x4 - core index']
  #allocation1 [shape = 'u32[72,128]{1,0:T(1,128)}', space=vmem, size = 0x9000, scoped, tag = 'internal scratch']
  %s0 = inlined_call_operand.vmem [shape: f32[2,12,8], index: 0, kind: input, shape index: {}]
  %s1 = inlined_call_operand.vmem [shape: f32[2,12,8], index: 1, kind: output, shape index: {0}]
  %s2 = inlined_call_operand.hbm [shape: f32[2,1,8], index: 2, kind: output, shape index: {1}]
  %3 = xla_tuple %s1, %s2
  %s4 = sld [smem:[#allocation0]]
  $region22: #{kp_layer_forward.1} parent=0
    _
  %s6 = ssub.s32 1, %s4
  %s7 = scalar_select 0, %s6, %s4
  $region1: #{kp_layer_forward.1} parent=0
    #allocation2 [shape = 'u8[1024]{0}', space=vmem, size = 0x400, scoped, tag = 'output window, operand 1, single buffered']
    #allocation3 [shape = 's32[1]{0}', space=sflag, size = 0x4, scoped, tag = 'scoped memory for kp_layer_forward.1']
    %8 = vsyncpa [#allocation3], 0
    // Predicated region
    $region2: #{kp_layer_forward.1} parent=1 // pred_check
      _
    $region3: #{kp_layer_forward.1} parent=1 // pred_check_branch
      %10 = sbr.rel (0) target = $region5
    $region4: #{kp_layer_forward.1} parent=1 // pred_region
      _
    $region5: #{kp_layer_forward.1} parent=1 // pred_fallthru
      _
    %v11 = vlaneseq
    %v12 = vshrl.u32 %v11, 7
    %v13 = vlaneseq
    %v14 = vand.u32 %v13, 127
    %vm15 = vcmp.eq.s32.totalorder %v12, %v14
    %v16 = vsel %vm15, 1, 0
    %v17 = vcvt.s32.f32 %v16
    %v18 = vld [vmem:[%s0] sm:$0xff]
    %v19 = vld [vmem:[%s0 + $0x8] sm:$0xf]
    %20 = vxpose.xlu0.b32.start [1/16] %v18, 128
    %21 = vxpose.xlu0.b32.cont [2/16] %v19, 128
    %22 = vxpose.xlu0.b32.cont [3/16] 0.0, 128
    %23 = vxpose.xlu0.b32.cont [4/16] 0.0, 128
    %24 = vxpose.xlu0.b32.cont [5/16] 0.0, 128
    %25 = vxpose.xlu0.b32.cont [6/16] 0.0, 128
    %26 = vxpose.xlu0.b32.cont [7/16] 0.0, 128
    %27 = vxpose.xlu0.b32.cont [8/16] 0.0, 128
    %28 = vxpose.xlu0.b32.cont [9/16] 0.0, 128
    %29 = vxpose.xlu0.b32.cont [10/16] 0.0, 128
    %30 = vxpose.xlu0.b32.cont [11/16] 0.0, 128
    %31 = vxpose.xlu0.b32.cont [12/16] 0.0, 128
    %32 = vxpose.xlu0.b32.cont [13/16] 0.0, 128
    %33 = vxpose.xlu0.b32.cont [14/16] 0.0, 128
    %34 = vxpose.xlu0.b32.cont [15/16] 0.0, 128
    %35 = vxpose.xlu0.b32.end [16/16] 0.0, 128
    %v36 = vpop.trf.xlu0
    %v37 = vpop.trf.xlu0
    %v38 = vpop.trf.xlu0
    %v39 = vpop.trf.xlu0
    %v40 = vpop.trf.xlu0
    %v41 = vpop.trf.xlu0
    %v42 = vpop.trf.xlu0
    %v43 = vpop.trf.xlu0
    %v44 = vpop.trf.xlu0
    %v45 = vpop.trf.xlu0
    %v46 = vpop.trf.xlu0
    %v47 = vpop.trf.xlu0
    %v48 = vpop.trf.xlu0
    %v49 = vpop.trf.xlu0
    %v50 = vpop.trf.xlu0
    %v51 = vpop.trf.xlu0
    %vm52 = vcmask 89088
    %v54 = vsel %vm52, %v36, 0
    %vm56 = vcmask 1042432
    %v58 = vsel %vm56, %v19, 0
    %60 = vmatpush.msra.mxu0 0.0
    %61 = vmatpush.msra.mxu0 0.0
    %62 = vmatpush.msra.mxu0 0.0
    %63 = vmatpush.msra.mxu0 0.0
    %64 = vmatpush.msra.mxu0 0.0
    %65 = vmatpush.msra.mxu0 0.0
    %66 = vmatpush.msra.mxu0 0.0
    %67 = vmatpush.msra.mxu0 0.0
    %68 = vmatpush.msra.mxu0 0.0
    %69 = vmatpush.msra.mxu0 0.0
    %70 = vmatpush.msra.mxu0 0.0
    %71 = vmatpush.msra.mxu0 0.0
    %72 = vmatpush.msra.mxu0 0.0
    %73 = vmatpush.msra.mxu0 0.0
    %74 = vmatpush.msra.mxu0 %v58
    %75 = vmatpush.msra.mxu0 %v18
    %76 = vmatmul.f32.gmra.mxu0 %v54
    %v77 = vpop.f32.mrf.mxu0
    %v78 = vadd.f32 0.0, %v77
    %79 = vdwg.mxu0
    %vm81 = vcmask 1046528
    %v82 = vrot.slane %v18, 1
    %v83 = vrot.slane %v19, 1
    %v84 = vsel %vm81, %v82, %v83
    %v86 = vsel %vm56, %v83, 0
    %88 = vmatpush.msra.mxu0 0.0
    %89 = vmatpush.msra.mxu0 0.0
    %90 = vmatpush.msra.mxu0 0.0
    %91 = vmatpush.msra.mxu0 0.0
    %92 = vmatpush.msra.mxu0 0.0
    %93 = vmatpush.msra.mxu0 0.0
    %94 = vmatpush.msra.mxu0 0.0
    %95 = vmatpush.msra.mxu0 0.0
    %96 = vmatpush.msra.mxu0 0.0
    %97 = vmatpush.msra.mxu0 0.0
    %98 = vmatpush.msra.mxu0 0.0
    %99 = vmatpush.msra.mxu0 0.0
    %100 = vmatpush.msra.mxu0 0.0
    %101 = vmatpush.msra.mxu0 0.0
    %102 = vmatpush.msra.mxu0 %v86
    %103 = vmatpush.msra.mxu0 %v84
    %104 = vmatmul.f32.gmra.mxu0 %v54
    %v105 = vpop.f32.mrf.mxu0
    %v106 = vadd.f32 0.0, %v105
    %107 = vdwg.mxu0
    %v108 = vmul.f32 %v78, %v17
    %vm109 = vcmask 64512
    %v110 = vsel %vm109, %v108, 0.0
    %111 = vadd.xlane.f32.xlu0 %v110
    %v112 = vpop.xlane.xlu0 %111
    %v113 = vrot.slane %v112, 4
    %v114 = vadd.f32 %v112, %v113
    %v115 = vrot.slane %v114, 2
    %v116 = vadd.f32 %v114, %v115
    %v117 = vrot.slane %v116, 1
    %v118 = vadd.f32 %v116, %v117
    %s119 = vtos %v118
    %v120 = vrcp.pop 8.0
    %v121 = vmul.f32 8.0, %v120
    %v122 = vsub.f32 1.0, %v121
    %v123 = vmul.f32 %v120, %v122
    %v124 = vadd.f32 %v120, %v123
    %vm125 = vweird.f32 %v120
    %v126 = vsel %vm125, %v120, %v124
    %s127 = vtos %v126
    %s128 = smul.f32 %s119, %s127
    %s129 = smul.f32 %s128, 1e-06
    %s130 = sadd.f32 %s129, 1e-10
    %v131 = vstv %s130
    %v132 = vmul.f32 %v131, %v17
    %v133 = vadd.f32 %v78, %v132
    %135 = vset.pattern.permute.xlu0 0
    %136 = vperm.xlu0 %135, %v133
    %v137 = vpop.permute.xlu0 %136
    %v139 = vrcp.pop %v137
    %v140 = vmul.f32 %v137, %v139
    %v141 = vsub.f32 1.0, %v140
    %v142 = vmul.f32 %v139, %v141
    %v143 = vadd.f32 %v139, %v142
    %vm144 = vweird.f32 %v137
    %vm145 = vweird.f32 %v139
    %vm146 = vmor %vm144, %vm145
    %v147 = vsel %vm146, %v139, %v143
    %v148 = vand.u32 2147483647, %v137
    %vm149 = vcmp.eq.f32.partialorder %v148, 8.507059e+37
    %v150 = vand.u32 %v137, 2147483648
    %v151 = vor.u32 1.1754944e-38, %v150
    %v152 = vsel %vm149, %v151, %v147
    %v153 = vmul.f32 %v133, %v152
    %v154 = vmul.f32 %v106, %v152
    %vm155 = vcmp.eq.s32.totalorder %v12, 0
    %v156 = vperm.slane %v153, 0
    %v157 = vmul.f32 %v137, %v156
    %v158 = vsub.f32 %v133, %v157
    %v159 = vsel %vm155, 1, 0
    %vm160 = vcmp.eq.s32.totalorder %v159, 1
    %v161 = vsel %vm160, %v156, %v158
    %v162 = vperm.slane %v154, 0
    %v163 = vmul.f32 %v137, %v162
    %v164 = vsub.f32 %v106, %v163
    %v165 = vsel %vm160, %v162, %v164
    %167 = vset.pattern.permute.xlu0 1
    %168 = vperm.xlu0 %167, %v161
    %v169 = vpop.permute.xlu0 %168
    %v171 = vrcp.pop %v169
    %v172 = vmul.f32 %v169, %v171
    %v173 = vsub.f32 1.0, %v172
    %v174 = vmul.f32 %v171, %v173
    %v175 = vadd.f32 %v171, %v174
    %vm176 = vweird.f32 %v169
    %vm177 = vweird.f32 %v171
    %vm178 = vmor %vm176, %vm177
    %v179 = vsel %vm178, %v171, %v175
    %v180 = vand.u32 2147483647, %v169
    %vm181 = vcmp.eq.f32.partialorder %v180, 8.507059e+37
    %v182 = vand.u32 %v169, 2147483648
    %v183 = vor.u32 1.1754944e-38, %v182
    %v184 = vsel %vm181, %v183, %v179
    %v185 = vmul.f32 %v161, %v184
    %v186 = vmul.f32 %v165, %v184
    %vm187 = vcmp.eq.s32.totalorder %v12, 1
    %v188 = vperm.slane %v185, 1
    %v189 = vmul.f32 %v169, %v188
    %v190 = vsub.f32 %v161, %v189
    %v191 = vsel %vm187, 1, 0
    %vm192 = vcmp.eq.s32.totalorder %v191, 1
    %v193 = vsel %vm192, %v188, %v190
    %v194 = vperm.slane %v186, 1
    %v195 = vmul.f32 %v169, %v194
    %v196 = vsub.f32 %v165, %v195
    %v197 = vsel %vm192, %v194, %v196
    %199 = vset.pattern.permute.xlu0 2
    %200 = vperm.xlu0 %199, %v193
    %v201 = vpop.permute.xlu0 %200
    %v203 = vrcp.pop %v201
    %v204 = vmul.f32 %v201, %v203
    %v205 = vsub.f32 1.0, %v204
    %v206 = vmul.f32 %v203, %v205
    %v207 = vadd.f32 %v203, %v206
    %vm208 = vweird.f32 %v201
    %vm209 = vweird.f32 %v203
    %vm210 = vmor %vm208, %vm209
    %v211 = vsel %vm210, %v203, %v207
    %v212 = vand.u32 2147483647, %v201
    %vm213 = vcmp.eq.f32.partialorder %v212, 8.507059e+37
    %v214 = vand.u32 %v201, 2147483648
    %v215 = vor.u32 1.1754944e-38, %v214
    %v216 = vsel %vm213, %v215, %v211
    %v217 = vmul.f32 %v193, %v216
    %v218 = vmul.f32 %v197, %v216
    %vm219 = vcmp.eq.s32.totalorder %v12, 2
    %v220 = vperm.slane %v217, 2
    %v221 = vmul.f32 %v201, %v220
    %v222 = vsub.f32 %v193, %v221
    %v223 = vsel %vm219, 1, 0
    %vm224 = vcmp.eq.s32.totalorder %v223, 1
    %v225 = vsel %vm224, %v220, %v222
    %v226 = vperm.slane %v218, 2
    %v227 = vmul.f32 %v201, %v226
    %v228 = vsub.f32 %v197, %v227
    %v229 = vsel %vm224, %v226, %v228
    %231 = vset.pattern.permute.xlu0 3
    %232 = vperm.xlu0 %231, %v225
    %v233 = vpop.permute.xlu0 %232
    %v235 = vrcp.pop %v233
    %v236 = vmul.f32 %v233, %v235
    %v237 = vsub.f32 1.0, %v236
    %v238 = vmul.f32 %v235, %v237
    %v239 = vadd.f32 %v235, %v238
    %vm240 = vweird.f32 %v233
    %vm241 = vweird.f32 %v235
    %vm242 = vmor %vm240, %vm241
    %v243 = vsel %vm242, %v235, %v239
    %v244 = vand.u32 2147483647, %v233
    %vm245 = vcmp.eq.f32.partialorder %v244, 8.507059e+37
    %v246 = vand.u32 %v233, 2147483648
    %v247 = vor.u32 1.1754944e-38, %v246
    %v248 = vsel %vm245, %v247, %v243
    %v249 = vmul.f32 %v225, %v248
    %v250 = vmul.f32 %v229, %v248
    %vm251 = vcmp.eq.s32.totalorder %v12, 3
    %v252 = vperm.slane %v249, 3
    %v253 = vmul.f32 %v233, %v252
    %v254 = vsub.f32 %v225, %v253
    %v255 = vsel %vm251, 1, 0
    %vm256 = vcmp.eq.s32.totalorder %v255, 1
    %v257 = vsel %vm256, %v252, %v254
    %v258 = vperm.slane %v250, 3
    %v259 = vmul.f32 %v233, %v258
    %v260 = vsub.f32 %v229, %v259
    %v261 = vsel %vm256, %v258, %v260
    %263 = vset.pattern.permute.xlu0 4
    %264 = vperm.xlu0 %263, %v257
    %v265 = vpop.permute.xlu0 %264
    %v267 = vrcp.pop %v265
    %v268 = vmul.f32 %v265, %v267
    %v269 = vsub.f32 1.0, %v268
    %v270 = vmul.f32 %v267, %v269
    %v271 = vadd.f32 %v267, %v270
    %vm272 = vweird.f32 %v265
    %vm273 = vweird.f32 %v267
    %vm274 = vmor %vm272, %vm273
    %v275 = vsel %vm274, %v267, %v271
    %v276 = vand.u32 2147483647, %v265
    %vm277 = vcmp.eq.f32.partialorder %v276, 8.507059e+37
    %v278 = vand.u32 %v265, 2147483648
    %v279 = vor.u32 1.1754944e-38, %v278
    %v280 = vsel %vm277, %v279, %v275
    %v281 = vmul.f32 %v257, %v280
    %v282 = vmul.f32 %v261, %v280
    %vm283 = vcmp.eq.s32.totalorder %v12, 4
    %v284 = vperm.slane %v281, 4
    %v285 = vmul.f32 %v265, %v284
    %v286 = vsub.f32 %v257, %v285
    %v287 = vsel %vm283, 1, 0
    %vm288 = vcmp.eq.s32.totalorder %v287, 1
    %v289 = vsel %vm288, %v284, %v286
    %v290 = vperm.slane %v282, 4
    %v291 = vmul.f32 %v265, %v290
    %v292 = vsub.f32 %v261, %v291
    %v293 = vsel %vm288, %v290, %v292
    %295 = vset.pattern.permute.xlu0 5
    %296 = vperm.xlu0 %295, %v289
    %v297 = vpop.permute.xlu0 %296
    %v299 = vrcp.pop %v297
    %v300 = vmul.f32 %v297, %v299
    %v301 = vsub.f32 1.0, %v300
    %v302 = vmul.f32 %v299, %v301
    %v303 = vadd.f32 %v299, %v302
    %vm304 = vweird.f32 %v297
    %vm305 = vweird.f32 %v299
    %vm306 = vmor %vm304, %vm305
    %v307 = vsel %vm306, %v299, %v303
    %v308 = vand.u32 2147483647, %v297
    %vm309 = vcmp.eq.f32.partialorder %v308, 8.507059e+37
    %v310 = vand.u32 %v297, 2147483648
    %v311 = vor.u32 1.1754944e-38, %v310
    %v312 = vsel %vm309, %v311, %v307
    %v313 = vmul.f32 %v289, %v312
    %v314 = vmul.f32 %v293, %v312
    %vm315 = vcmp.eq.s32.totalorder %v12, 5
    %v316 = vperm.slane %v313, 5
    %v317 = vmul.f32 %v297, %v316
    %v318 = vsub.f32 %v289, %v317
    %v319 = vsel %vm315, 1, 0
    %vm320 = vcmp.eq.s32.totalorder %v319, 1
    %v321 = vsel %vm320, %v316, %v318
    %v322 = vperm.slane %v314, 5
    %v323 = vmul.f32 %v297, %v322
    %v324 = vsub.f32 %v293, %v323
    %v325 = vsel %vm320, %v322, %v324
    %327 = vset.pattern.permute.xlu0 6
    %328 = vperm.xlu0 %327, %v321
    %v329 = vpop.permute.xlu0 %328
    %v331 = vrcp.pop %v329
    %v332 = vmul.f32 %v329, %v331
    %v333 = vsub.f32 1.0, %v332
    %v334 = vmul.f32 %v331, %v333
    %v335 = vadd.f32 %v331, %v334
    %vm336 = vweird.f32 %v329
    %vm337 = vweird.f32 %v331
    %vm338 = vmor %vm336, %vm337
    %v339 = vsel %vm338, %v331, %v335
    %v340 = vand.u32 2147483647, %v329
    %vm341 = vcmp.eq.f32.partialorder %v340, 8.507059e+37
    %v342 = vand.u32 %v329, 2147483648
    %v343 = vor.u32 1.1754944e-38, %v342
    %v344 = vsel %vm341, %v343, %v339
    %v345 = vmul.f32 %v321, %v344
    %v346 = vmul.f32 %v325, %v344
    %vm347 = vcmp.eq.s32.totalorder %v12, 6
    %v348 = vperm.slane %v345, 6
    %v349 = vmul.f32 %v329, %v348
    %v350 = vsub.f32 %v321, %v349
    %v351 = vsel %vm347, 1, 0
    %vm352 = vcmp.eq.s32.totalorder %v351, 1
    %v353 = vsel %vm352, %v348, %v350
    %v354 = vperm.slane %v346, 6
    %v355 = vmul.f32 %v329, %v354
    %v356 = vsub.f32 %v325, %v355
    %v357 = vsel %vm352, %v354, %v356
    %359 = vset.pattern.permute.xlu0 7
    %360 = vperm.xlu0 %359, %v353
    %v361 = vpop.permute.xlu0 %360
    %v363 = vrcp.pop %v361
    %v364 = vmul.f32 %v361, %v363
    %v365 = vsub.f32 1.0, %v364
    %v366 = vmul.f32 %v363, %v365
    %v367 = vadd.f32 %v363, %v366
    %vm368 = vweird.f32 %v361
    %vm369 = vweird.f32 %v363
    %vm370 = vmor %vm368, %vm369
    %v371 = vsel %vm370, %v363, %v367
    %v372 = vand.u32 2147483647, %v361
    %vm373 = vcmp.eq.f32.partialorder %v372, 8.507059e+37
    %v374 = vand.u32 %v361, 2147483648
    %v375 = vor.u32 1.1754944e-38, %v374
    %v376 = vsel %vm373, %v375, %v371
    %v377 = vmul.f32 %v357, %v376
    %vm378 = vcmp.eq.s32.totalorder %v12, 7
    %v379 = vperm.slane %v377, 7
    %v380 = vmul.f32 %v361, %v379
    %v381 = vsub.f32 %v357, %v380
    %v382 = vsel %vm378, 1, 0
    %vm383 = vcmp.eq.s32.totalorder %v382, 1
    %v384 = vsel %vm383, %v379, %v381
    %v385 = vsel %vm109, %v18, 0
    %v387 = vsel %vm109, %v19, 0
    %389 = vmatpush.msra.mxu0 0.0
    %390 = vmatpush.msra.mxu0 0.0
    %391 = vmatpush.msra.mxu0 0.0
    %392 = vmatpush.msra.mxu0 0.0
    %393 = vmatpush.msra.mxu0 0.0
    %394 = vmatpush.msra.mxu0 0.0
    %395 = vmatpush.msra.mxu0 0.0
    %396 = vmatpush.msra.mxu0 0.0
    %397 = vmatpush.msra.mxu0 0.0
    %398 = vmatpush.msra.mxu0 0.0
    %399 = vmatpush.msra.mxu0 0.0
    %400 = vmatpush.msra.mxu0 0.0
    %401 = vmatpush.msra.mxu0 0.0
    %402 = vmatpush.msra.mxu0 0.0
    %403 = vmatpush.msra.mxu0 0.0
    %404 = vmatpush.msra.mxu0 %v384
    %405 = vmatmul.f32.gmra.mxu0 %v385
    %v406 = vpop.f32.mrf.mxu0
    %v407 = vadd.f32 0.0, %v406
    %408 = vmatmul.f32.gmra.mxu0 %v387
    %v409 = vpop.f32.mrf.mxu0
    %v410 = vadd.f32 0.0, %v409
    %411 = vdwg.mxu0
    %vm414 = vcmask 1040384
    %v415 = vrot.slane %v407, 7
    %v416 = vrot.slane %v410, 7
    %v417 = vsel %vm414, %v415, %v416
    %v420 = vsel %vm414, %v18, %v415
    %421 = vst.msk [vmem:[%s1] sm:$0xff] %vm109, %v420
    %vm422 = vcmask 60416
    %423 = vst.msk [vmem:[%s1 + $0x8] sm:$0xf] %vm422, %v417
    %vm424 = vcmask 60419
    %425 = vst.msk [vmem:[#allocation2 - $0x3] sm:$0x8] %vm424, %v410
    %s426 = scalar_lea.vmem %s0, 16
    %v427 = vld [vmem:[%s426] sm:$0xff]
    %v428 = vld [vmem:[%s426 + $0x8] sm:$0xf]
    %429 = vxpose.xlu0.b32.start [1/16] %v427, 128
    %430 = vxpose.xlu0.b32.cont [2/16] %v428, 128
    %431 = vxpose.xlu0.b32.cont [3/16] 0.0, 128
    %432 = vxpose.xlu0.b32.cont [4/16] 0.0, 128
    %433 = vxpose.xlu0.b32.cont [5/16] 0.0, 128
    %434 = vxpose.xlu0.b32.cont [6/16] 0.0, 128
    %435 = vxpose.xlu0.b32.cont [7/16] 0.0, 128
    %436 = vxpose.xlu0.b32.cont [8/16] 0.0, 128
    %437 = vxpose.xlu0.b32.cont [9/16] 0.0, 128
    %438 = vxpose.xlu0.b32.cont [10/16] 0.0, 128
    %439 = vxpose.xlu0.b32.cont [11/16] 0.0, 128
    %440 = vxpose.xlu0.b32.cont [12/16] 0.0, 128
    %441 = vxpose.xlu0.b32.cont [13/16] 0.0, 128
    %442 = vxpose.xlu0.b32.cont [14/16] 0.0, 128
    %443 = vxpose.xlu0.b32.cont [15/16] 0.0, 128
    %444 = vxpose.xlu0.b32.end [16/16] 0.0, 128
    %v445 = vpop.trf.xlu0
    %v446 = vpop.trf.xlu0
    %v447 = vpop.trf.xlu0
    %v448 = vpop.trf.xlu0
    %v449 = vpop.trf.xlu0
    %v450 = vpop.trf.xlu0
    %v451 = vpop.trf.xlu0
    %v452 = vpop.trf.xlu0
    %v453 = vpop.trf.xlu0
    %v454 = vpop.trf.xlu0
    %v455 = vpop.trf.xlu0
    %v456 = vpop.trf.xlu0
    %v457 = vpop.trf.xlu0
    %v458 = vpop.trf.xlu0
    %v459 = vpop.trf.xlu0
    %v460 = vpop.trf.xlu0
    %v462 = vsel %vm52, %v445, 0
    %v465 = vsel %vm56, %v428, 0
    %467 = vmatpush.msra.mxu0 0.0
    %468 = vmatpush.msra.mxu0 0.0
    %469 = vmatpush.msra.mxu0 0.0
    %470 = vmatpush.msra.mxu0 0.0
    %471 = vmatpush.msra.mxu0 0.0
    %472 = vmatpush.msra.mxu0 0.0
    %473 = vmatpush.msra.mxu0 0.0
    %474 = vmatpush.msra.mxu0 0.0
    %475 = vmatpush.msra.mxu0 0.0
    %476 = vmatpush.msra.mxu0 0.0
    %477 = vmatpush.msra.mxu0 0.0
    %478 = vmatpush.msra.mxu0 0.0
    %479 = vmatpush.msra.mxu0 0.0
    %480 = vmatpush.msra.mxu0 0.0
    %481 = vmatpush.msra.mxu0 %v465
    %482 = vmatpush.msra.mxu0 %v427
    %483 = vmatmul.f32.gmra.mxu0 %v462
    %v484 = vpop.f32.mrf.mxu0
    %v485 = vadd.f32 0.0, %v484
    %486 = vdwg.mxu0
    %v488 = vrot.slane %v427, 1
    %v489 = vrot.slane %v428, 1
    %v490 = vsel %vm81, %v488, %v489
    %v492 = vsel %vm56, %v489, 0
    %494 = vmatpush.msra.mxu0 0.0
    %495 = vmatpush.msra.mxu0 0.0
    %496 = vmatpush.msra.mxu0 0.0
    %497 = vmatpush.msra.mxu0 0.0
    %498 = vmatpush.msra.mxu0 0.0
    %499 = vmatpush.msra.mxu0 0.0
    %500 = vmatpush.msra.mxu0 0.0
    %501 = vmatpush.msra.mxu0 0.0
    %502 = vmatpush.msra.mxu0 0.0
    %503 = vmatpush.msra.mxu0 0.0
    %504 = vmatpush.msra.mxu0 0.0
    %505 = vmatpush.msra.mxu0 0.0
    %506 = vmatpush.msra.mxu0 0.0
    %507 = vmatpush.msra.mxu0 0.0
    %508 = vmatpush.msra.mxu0 %v492
    %509 = vmatpush.msra.mxu0 %v490
    %510 = vmatmul.f32.gmra.mxu0 %v462
    %v511 = vpop.f32.mrf.mxu0
    %v512 = vadd.f32 0.0, %v511
    %513 = vdwg.mxu0
    %v514 = vmul.f32 %v485, %v17
    %v515 = vsel %vm109, %v514, 0.0
    %516 = vadd.xlane.f32.xlu0 %v515
    %v517 = vpop.xlane.xlu0 %516
    %v518 = vrot.slane %v517, 4
    %v519 = vadd.f32 %v517, %v518
    %v520 = vrot.slane %v519, 2
    %v521 = vadd.f32 %v519, %v520
    %v522 = vrot.slane %v521, 1
    %v523 = vadd.f32 %v521, %v522
    %s524 = vtos %v523
    %v525 = vrcp.pop 8.0
    %v526 = vmul.f32 8.0, %v525
    %v527 = vsub.f32 1.0, %v526
    %v528 = vmul.f32 %v525, %v527
    %v529 = vadd.f32 %v525, %v528
    %vm530 = vweird.f32 %v525
    %v531 = vsel %vm530, %v525, %v529
    %s532 = vtos %v531
    %s533 = smul.f32 %s524, %s532
    %s534 = smul.f32 %s533, 1e-06
    %s535 = sadd.f32 %s534, 1e-10
    %v536 = vstv %s535
    %v537 = vmul.f32 %v536, %v17
    %v538 = vadd.f32 %v485, %v537
    %540 = vset.pattern.permute.xlu0 0
    %541 = vperm.xlu0 %540, %v538
    %v542 = vpop.permute.xlu0 %541
    %v544 = vrcp.pop %v542
    %v545 = vmul.f32 %v542, %v544
    %v546 = vsub.f32 1.0, %v545
    %v547 = vmul.f32 %v544, %v546
    %v548 = vadd.f32 %v544, %v547
    %vm549 = vweird.f32 %v542
    %vm550 = vweird.f32 %v544
    %vm551 = vmor %vm549, %vm550
    %v552 = vsel %vm551, %v544, %v548
    %v553 = vand.u32 2147483647, %v542
    %vm554 = vcmp.eq.f32.partialorder %v553, 8.507059e+37
    %v555 = vand.u32 %v542, 2147483648
    %v556 = vor.u32 1.1754944e-38, %v555
    %v557 = vsel %vm554, %v556, %v552
    %v558 = vmul.f32 %v538, %v557
    %v559 = vmul.f32 %v512, %v557
    %v560 = vperm.slane %v558, 0
    %v561 = vmul.f32 %v542, %v560
    %v562 = vsub.f32 %v538, %v561
    %v563 = vsel %vm160, %v560, %v562
    %v564 = vperm.slane %v559, 0
    %v565 = vmul.f32 %v542, %v564
    %v566 = vsub.f32 %v512, %v565
    %v567 = vsel %vm160, %v564, %v566
    %569 = vset.pattern.permute.xlu0 1
    %570 = vperm.xlu0 %569, %v563
    %v571 = vpop.permute.xlu0 %570
    %v573 = vrcp.pop %v571
    %v574 = vmul.f32 %v571, %v573
    %v575 = vsub.f32 1.0, %v574
    %v576 = vmul.f32 %v573, %v575
    %v577 = vadd.f32 %v573, %v576
    %vm578 = vweird.f32 %v571
    %vm579 = vweird.f32 %v573
    %vm580 = vmor %vm578, %vm579
    %v581 = vsel %vm580, %v573, %v577
    %v582 = vand.u32 2147483647, %v571
    %vm583 = vcmp.eq.f32.partialorder %v582, 8.507059e+37
    %v584 = vand.u32 %v571, 2147483648
    %v585 = vor.u32 1.1754944e-38, %v584
    %v586 = vsel %vm583, %v585, %v581
    %v587 = vmul.f32 %v563, %v586
    %v588 = vmul.f32 %v567, %v586
    %v589 = vperm.slane %v587, 1
    %v590 = vmul.f32 %v571, %v589
    %v591 = vsub.f32 %v563, %v590
    %v592 = vsel %vm192, %v589, %v591
    %v593 = vperm.slane %v588, 1
    %v594 = vmul.f32 %v571, %v593
    %v595 = vsub.f32 %v567, %v594
    %v596 = vsel %vm192, %v593, %v595
    %598 = vset.pattern.permute.xlu0 2
    %599 = vperm.xlu0 %598, %v592
    %v600 = vpop.permute.xlu0 %599
    %v602 = vrcp.pop %v600
    %v603 = vmul.f32 %v600, %v602
    %v604 = vsub.f32 1.0, %v603
    %v605 = vmul.f32 %v602, %v604
    %v606 = vadd.f32 %v602, %v605
    %vm607 = vweird.f32 %v600
    %vm608 = vweird.f32 %v602
    %vm609 = vmor %vm607, %vm608
    %v610 = vsel %vm609, %v602, %v606
    %v611 = vand.u32 2147483647, %v600
    %vm612 = vcmp.eq.f32.partialorder %v611, 8.507059e+37
    %v613 = vand.u32 %v600, 2147483648
    %v614 = vor.u32 1.1754944e-38, %v613
    %v615 = vsel %vm612, %v614, %v610
    %v616 = vmul.f32 %v592, %v615
    %v617 = vmul.f32 %v596, %v615
    %v618 = vperm.slane %v616, 2
    %v619 = vmul.f32 %v600, %v618
    %v620 = vsub.f32 %v592, %v619
    %v621 = vsel %vm224, %v618, %v620
    %v622 = vperm.slane %v617, 2
    %v623 = vmul.f32 %v600, %v622
    %v624 = vsub.f32 %v596, %v623
    %v625 = vsel %vm224, %v622, %v624
    %627 = vset.pattern.permute.xlu0 3
    %628 = vperm.xlu0 %627, %v621
    %v629 = vpop.permute.xlu0 %628
    %v631 = vrcp.pop %v629
    %v632 = vmul.f32 %v629, %v631
    %v633 = vsub.f32 1.0, %v632
    %v634 = vmul.f32 %v631, %v633
    %v635 = vadd.f32 %v631, %v634
    %vm636 = vweird.f32 %v629
    %vm637 = vweird.f32 %v631
    %vm638 = vmor %vm636, %vm637
    %v639 = vsel %vm638, %v631, %v635
    %v640 = vand.u32 2147483647, %v629
    %vm641 = vcmp.eq.f32.partialorder %v640, 8.507059e+37
    %v642 = vand.u32 %v629, 2147483648
    %v643 = vor.u32 1.1754944e-38, %v642
    %v644 = vsel %vm641, %v643, %v639
    %v645 = vmul.f32 %v621, %v644
    %v646 = vmul.f32 %v625, %v644
    %v647 = vperm.slane %v645, 3
    %v648 = vmul.f32 %v629, %v647
    %v649 = vsub.f32 %v621, %v648
    %v650 = vsel %vm256, %v647, %v649
    %v651 = vperm.slane %v646, 3
    %v652 = vmul.f32 %v629, %v651
    %v653 = vsub.f32 %v625, %v652
    %v654 = vsel %vm256, %v651, %v653
    %656 = vset.pattern.permute.xlu0 4
    %657 = vperm.xlu0 %656, %v650
    %v658 = vpop.permute.xlu0 %657
    %v660 = vrcp.pop %v658
    %v661 = vmul.f32 %v658, %v660
    %v662 = vsub.f32 1.0, %v661
    %v663 = vmul.f32 %v660, %v662
    %v664 = vadd.f32 %v660, %v663
    %vm665 = vweird.f32 %v658
    %vm666 = vweird.f32 %v660
    %vm667 = vmor %vm665, %vm666
    %v668 = vsel %vm667, %v660, %v664
    %v669 = vand.u32 2147483647, %v658
    %vm670 = vcmp.eq.f32.partialorder %v669, 8.507059e+37
    %v671 = vand.u32 %v658, 2147483648
    %v672 = vor.u32 1.1754944e-38, %v671
    %v673 = vsel %vm670, %v672, %v668
    %v674 = vmul.f32 %v650, %v673
    %v675 = vmul.f32 %v654, %v673
    %v676 = vperm.slane %v674, 4
    %v677 = vmul.f32 %v658, %v676
    %v678 = vsub.f32 %v650, %v677
    %v679 = vsel %vm288, %v676, %v678
    %v680 = vperm.slane %v675, 4
    %v681 = vmul.f32 %v658, %v680
    %v682 = vsub.f32 %v654, %v681
    %v683 = vsel %vm288, %v680, %v682
    %685 = vset.pattern.permute.xlu0 5
    %686 = vperm.xlu0 %685, %v679
    %v687 = vpop.permute.xlu0 %686
    %v689 = vrcp.pop %v687
    %v690 = vmul.f32 %v687, %v689
    %v691 = vsub.f32 1.0, %v690
    %v692 = vmul.f32 %v689, %v691
    %v693 = vadd.f32 %v689, %v692
    %vm694 = vweird.f32 %v687
    %vm695 = vweird.f32 %v689
    %vm696 = vmor %vm694, %vm695
    %v697 = vsel %vm696, %v689, %v693
    %v698 = vand.u32 2147483647, %v687
    %vm699 = vcmp.eq.f32.partialorder %v698, 8.507059e+37
    %v700 = vand.u32 %v687, 2147483648
    %v701 = vor.u32 1.1754944e-38, %v700
    %v702 = vsel %vm699, %v701, %v697
    %v703 = vmul.f32 %v679, %v702
    %v704 = vmul.f32 %v683, %v702
    %v705 = vperm.slane %v703, 5
    %v706 = vmul.f32 %v687, %v705
    %v707 = vsub.f32 %v679, %v706
    %v708 = vsel %vm320, %v705, %v707
    %v709 = vperm.slane %v704, 5
    %v710 = vmul.f32 %v687, %v709
    %v711 = vsub.f32 %v683, %v710
    %v712 = vsel %vm320, %v709, %v711
    %714 = vset.pattern.permute.xlu0 6
    %715 = vperm.xlu0 %714, %v708
    %v716 = vpop.permute.xlu0 %715
    %v718 = vrcp.pop %v716
    %v719 = vmul.f32 %v716, %v718
    %v720 = vsub.f32 1.0, %v719
    %v721 = vmul.f32 %v718, %v720
    %v722 = vadd.f32 %v718, %v721
    %vm723 = vweird.f32 %v716
    %vm724 = vweird.f32 %v718
    %vm725 = vmor %vm723, %vm724
    %v726 = vsel %vm725, %v718, %v722
    %v727 = vand.u32 2147483647, %v716
    %vm728 = vcmp.eq.f32.partialorder %v727, 8.507059e+37
    %v729 = vand.u32 %v716, 2147483648
    %v730 = vor.u32 1.1754944e-38, %v729
    %v731 = vsel %vm728, %v730, %v726
    %v732 = vmul.f32 %v708, %v731
    %v733 = vmul.f32 %v712, %v731
    %v734 = vperm.slane %v732, 6
    %v735 = vmul.f32 %v716, %v734
    %v736 = vsub.f32 %v708, %v735
    %v737 = vsel %vm352, %v734, %v736
    %v738 = vperm.slane %v733, 6
    %v739 = vmul.f32 %v716, %v738
    %v740 = vsub.f32 %v712, %v739
    %v741 = vsel %vm352, %v738, %v740
    %743 = vset.pattern.permute.xlu0 7
    %744 = vperm.xlu0 %743, %v737
    %v745 = vpop.permute.xlu0 %744
    %v747 = vrcp.pop %v745
    %v748 = vmul.f32 %v745, %v747
    %v749 = vsub.f32 1.0, %v748
    %v750 = vmul.f32 %v747, %v749
    %v751 = vadd.f32 %v747, %v750
    %vm752 = vweird.f32 %v745
    %vm753 = vweird.f32 %v747
    %vm754 = vmor %vm752, %vm753
    %v755 = vsel %vm754, %v747, %v751
    %v756 = vand.u32 2147483647, %v745
    %vm757 = vcmp.eq.f32.partialorder %v756, 8.507059e+37
    %v758 = vand.u32 %v745, 2147483648
    %v759 = vor.u32 1.1754944e-38, %v758
    %v760 = vsel %vm757, %v759, %v755
    %v761 = vmul.f32 %v741, %v760
    %v762 = vperm.slane %v761, 7
    %v763 = vmul.f32 %v745, %v762
    %v764 = vsub.f32 %v741, %v763
    %v765 = vsel %vm383, %v762, %v764
    %v766 = vsel %vm109, %v427, 0
    %v768 = vsel %vm109, %v428, 0
    %770 = vmatpush.msra.mxu0 0.0
    %771 = vmatpush.msra.mxu0 0.0
    %772 = vmatpush.msra.mxu0 0.0
    %773 = vmatpush.msra.mxu0 0.0
    %774 = vmatpush.msra.mxu0 0.0
    %775 = vmatpush.msra.mxu0 0.0
    %776 = vmatpush.msra.mxu0 0.0
    %777 = vmatpush.msra.mxu0 0.0
    %778 = vmatpush.msra.mxu0 0.0
    %779 = vmatpush.msra.mxu0 0.0
    %780 = vmatpush.msra.mxu0 0.0
    %781 = vmatpush.msra.mxu0 0.0
    %782 = vmatpush.msra.mxu0 0.0
    %783 = vmatpush.msra.mxu0 0.0
    %784 = vmatpush.msra.mxu0 0.0
    %785 = vmatpush.msra.mxu0 %v765
    %786 = vmatmul.f32.gmra.mxu0 %v766
    %v787 = vpop.f32.mrf.mxu0
    %v788 = vadd.f32 0.0, %v787
    %789 = vmatmul.f32.gmra.mxu0 %v768
    %v790 = vpop.f32.mrf.mxu0
    %v791 = vadd.f32 0.0, %v790
    %792 = vdwg.mxu0
    %v795 = vrot.slane %v788, 7
    %v796 = vrot.slane %v791, 7
    %v797 = vsel %vm414, %v795, %v796
    %v800 = vsel %vm414, %v427, %v795
    %s801 = scalar_lea.vmem %s1, 16
    %802 = vst.msk [vmem:[%s801] sm:$0xff] %vm109, %v800
    %803 = vst.msk [vmem:[%s801 + $0x8] sm:$0xf] %vm422, %v797
    %s804 = scalar_lea.vmem [#allocation2], 1
    %805 = vst.msk [vmem:[%s804 - $0x3] sm:$0x8] %vm424, %v791
    // Predicated region
    $region6: #{kp_layer_forward.1} parent=1 // pred_check
      _
    $region7: #{kp_layer_forward.1} parent=1 // pred_check_branch
      %807 = sbr.rel (0) target = $region9
    $region8: #{kp_layer_forward.1} parent=1 // pred_region
      _
    $region9: #{kp_layer_forward.1} parent=1 // pred_fallthru
      _
    // Predicated region
    $region10: #{kp_layer_forward.1} parent=1 // pred_check
      _
    $region11: #{kp_layer_forward.1} parent=1 // pred_check_branch
      %809 = sbr.rel (0) target = $region13
    $region12: #{kp_layer_forward.1} parent=1 // pred_region
      %811 = vsyncadd [#allocation3], 0
      %s812 = sshll.u32 [#allocation2], 4
      %s813 = int_to_ptr.vmem [resolvable:$true] %s812
      %s814 = sshll.u32 %s2, 4
      %s815 = int_to_ptr.hbm [resolvable:$true] %s814
      %820 = dma.vmem_to_hbm [thread:$0]  %s813, 32, %s815, [#allocation3], 16, 16, 1
    $region13: #{kp_layer_forward.1} parent=1 // pred_fallthru
      _
    // Predicated region
    $region14: #{kp_layer_forward.1} parent=1 // pred_check
      _
    $region15: #{kp_layer_forward.1} parent=1 // pred_check_branch
      %822 = sbr.rel (0) target = $region17
    $region16: #{kp_layer_forward.1} parent=1 // pred_region
      _
    $region17: #{kp_layer_forward.1} parent=1 // pred_fallthru
      _
    // Predicated region
    $region18: #{kp_layer_forward.1} parent=1 // pred_check
      _
    $region19: #{kp_layer_forward.1} parent=1 // pred_check_branch
      %824 = sbr.rel (0) target = $region21
    $region20: #{kp_layer_forward.1} parent=1 // pred_region
      %826 = dma.done [#allocation3], 32
    $region21: #{kp_layer_forward.1} parent=1 // pred_fallthru
      _
    %827 = vsyncpa [#allocation3], 1

</llo_original>
